<compile_context>
chip_gen: v7x
topology: tpu7x:2x2x1
jax: 0.10.0
libtpu: 0.0.40
codegen_flags: <defaults>
</compile_context>

<pallas_src>
import functools

import jax
import jax.numpy as jnp
from jax.experimental import pallas as pl
from jax.experimental.pallas import tpu as pltpu

_LANE = 128      # lane width: pad all feature dims to a multiple of this


def _round_up(n, m):
    return ((n + m - 1) // m) * m


def _vmem_capacity_bytes():
    """Physical VMEM per TensorCore (128 MiB v5e/v6e, 64 MiB v7x)."""
    try:
        info = pltpu.get_tpu_info()
        cap = (getattr(info, "vmem_capacity_bytes", None)
               or getattr(info, "vmem_bytes", None))
        if cap:
            return int(cap)
    except Exception:
        pass
    return 64 << 20   # conservative fallback (v7x-sized)


def _autoencoder_kernel(x_ref,
                        w1_ref, b1_ref,   # encoder.linear1: entry -> e_mid
                        w2_ref, b2_ref,   # encoder.linear2: e_mid -> latent
                        w3_ref, b3_ref,   # decoder.linear1: latent -> d_mid
                        w4_ref, b4_ref,   # decoder.linear2: d_mid -> entry
                        o_ref):
    cdt = w1_ref.dtype                    # compute dtype (bf16 or f32)
    # x streams in as f32; cast on the VPU right before the first MXU op.
    x = x_ref[...].astype(cdt)                                       # [TB, entry_p]
    # Encoder (bias add / ReLU kept in f32 on the VPU, then cast)
    h = jnp.dot(x, w1_ref[...], preferred_element_type=jnp.float32) + b1_ref[...]
    h = jnp.maximum(h, 0.0).astype(cdt)                              # ReLU
    z = (jnp.dot(h, w2_ref[...], preferred_element_type=jnp.float32)
         + b2_ref[...]).astype(cdt)
    # Decoder
    d = jnp.dot(z, w3_ref[...], preferred_element_type=jnp.float32) + b3_ref[...]
    d = jnp.maximum(d, 0.0).astype(cdt)                              # ReLU
    o_ref[...] = (jnp.dot(d, w4_ref[...], preferred_element_type=jnp.float32)
                  + b4_ref[...]).astype(o_ref.dtype)                 # [TB, out_p]


@functools.partial(jax.jit,
                   static_argnames=("tb", "use_pipeline_mode", "x_buffers",
                                    "vmem_limit"))
def _forward_padded(x_p, params, *, tb, use_pipeline_mode, x_buffers, vmem_limit):
    """x_p: [B_p, entry_p], B_p % tb == 0, entry_p == w1.shape[0]."""
    w1, b1, w2, b2, w3, b3, w4, b4 = params
    cdt = w1.dtype
    B_p, entry_p = x_p.shape
    out_p = w4.shape[1]
    num_tiles = B_p // tb

    def resident(shape):
        if use_pipeline_mode:
            # Block index never changes -> one DMA, one VMEM buffer.
            return pl.BlockSpec(shape, lambda i: (0, 0),
                                pipeline_mode=pl.Buffered(1))
        return pl.BlockSpec(shape, lambda i: (0, 0))

    if use_pipeline_mode and x_buffers != 2:
        x_spec = pl.BlockSpec((tb, entry_p), lambda i: (i, 0),
                              pipeline_mode=pl.Buffered(x_buffers))
    else:
        x_spec = pl.BlockSpec((tb, entry_p), lambda i: (i, 0))

    return pl.pallas_call(
        _autoencoder_kernel,
        out_shape=jax.ShapeDtypeStruct((B_p, out_p), cdt),  # compute-dtype output
        grid=(num_tiles,),
        in_specs=[
            x_spec,
            resident(w1.shape), resident(b1.shape),
            resident(w2.shape), resident(b2.shape),
            resident(w3.shape), resident(b3.shape),
            resident(w4.shape), resident(b4.shape),
        ],
        out_specs=pl.BlockSpec((tb, out_p), lambda i: (i, 0)),
        compiler_params=pltpu.CompilerParams(
            dimension_semantics=("parallel",),   # megacore-shardable batch axis
            vmem_limit_bytes=vmem_limit),
    )(x_p, w1, b1, w2, b2, w3, b3, w4, b4)


# Probed once: does this JAX build accept pipeline_mode=pl.Buffered(...) on
# pallas_call BlockSpecs?  None = unknown, True/False after first attempt.
_PIPELINE_MODE_SUPPORTED = None


def autoencoder_forward(x, params, *, entry_size, block_b=None, x_buffers=2):
    """x: [B, ...] (flattened to [B, entry_size]); params from prepare_params().
    Returns [B, entry_size] in the params' compute dtype (bf16 or f32)."""
    global _PIPELINE_MODE_SUPPORTED
    w1 = params[0]
    cdt = w1.dtype
    B = x.shape[0]
    x2d = x.reshape(B, -1)

    entry_p = w1.shape[0]
    e_mid_p = w1.shape[1]
    latent_p = params[2].shape[1]
    d_mid_p = params[4].shape[1]
    out_p = params[6].shape[1]

    weight_bytes = sum(int(p.size) * p.dtype.itemsize for p in params)
    x_item = jnp.dtype(x2d.dtype).itemsize
    c_item = jnp.dtype(cdt).itemsize
    cap = _vmem_capacity_bytes()
    xb = max(int(x_buffers), 2)

    # --- batch tile: dtype-aware sublane rounding (bf16 packs 16 rows/vreg) ---
    sub = 8 if c_item >= 4 else (16 if c_item == 2 else 32)
    # Per-row VMEM cost of a batch tile (pipelined x buffers, double-buffered
    # output tile, f32 intermediates): used to auto-size TB from the budget.
    row_bytes = (xb * entry_p * x_item
                 + 2 * out_p * c_item
                 + (entry_p + e_mid_p + latent_p + d_mid_p + out_p) * 4)
    # Budget weights twice so the chosen tile stays valid even on the
    # double-buffered (no pipeline_mode) fallback path.
    avail = max(cap - (8 << 20) - 2 * weight_bytes - (2 << 20), 4 << 20)
    tb = max(min(int(avail // row_bytes), 1024) // sub * sub, sub)
    if block_b is not None:
        tb = max(min(tb, int(block_b)) // sub * sub, sub)
    tb = min(tb, _round_up(B, sub))

    B_p = _round_up(B, tb)
    feat = x2d.shape[1]
    # Pad only when unavoidable (ragged batch tail / feature remainder); never
    # pre-cast x in the wrapper -- the kernel casts on the VPU.  Padded tail
    # rows compute throwaway values and are sliced off below.
    if B_p != B or feat != entry_p:
        x_in = jnp.pad(x2d, ((0, B_p - B), (0, entry_p - feat)))
    else:
        x_in = x2d

    def _budget(single_buffer_weights):
        wb = (1 if single_buffer_weights else 2) * weight_bytes
        io = xb * tb * entry_p * x_item + 2 * tb * out_p * c_item
        act = tb * (entry_p + e_mid_p + latent_p + d_mid_p + out_p) * 4
        need = wb + io + act + (4 << 20)
        return int(min(max(need, 32 << 20), max(cap - (8 << 20), 16 << 20)))

    def _run(use_pm):
        return _forward_padded(x_in, params, tb=tb, use_pipeline_mode=use_pm,
                               x_buffers=int(x_buffers),
                               vmem_limit=_budget(use_pm))

    if _PIPELINE_MODE_SUPPORTED is False:
        out = _run(False)
    else:
        try:
            out = _run(True)
            if _PIPELINE_MODE_SUPPORTED is None:
                out = jax.block_until_ready(out)
                _PIPELINE_MODE_SUPPORTED = True
        except Exception:
            _PIPELINE_MODE_SUPPORTED = False
            out = _run(False)

    return out[:B, :entry_size]


def init_params(key, entry_size, latent_dims):
    """Logical (unpadded) params mimicking nn.Linear default init
    (uniform +-1/sqrt(fan_in)). Weights stored pre-transposed as [in, out]."""
    e_mid = latent_dims + (entry_size - latent_dims) // 2
    d_mid = latent_dims + (entry_size - latent_dims) // 2
    dims = [
        (entry_size, e_mid),     # encoder.linear1
        (e_mid, latent_dims),    # encoder.linear2
        (latent_dims, d_mid),    # decoder.linear1
        (d_mid, entry_size),     # decoder.linear2
    ]
    params = []
    keys = jax.random.split(key, 2 * len(dims))
    for i, (fan_in, fan_out) in enumerate(dims):
        bound = 1.0 / jnp.sqrt(jnp.float32(fan_in))
        w = jax.random.uniform(keys[2 * i], (fan_in, fan_out),
                               minval=-bound, maxval=bound, dtype=jnp.float32)
        b = jax.random.uniform(keys[2 * i + 1], (1, fan_out),
                               minval=-bound, maxval=bound, dtype=jnp.float32)
        params.extend([w, b])
    return tuple(params)


def prepare_params(params, compute_dtype=jnp.bfloat16):
    """Zero-pad every feature dim up to a multiple of 128 (lane-dense) and cast
    weights to the compute dtype; biases stay f32 (added post-accumulation)."""
    w1, b1, w2, b2, w3, b3, w4, b4 = params
    out = []
    for w, b in ((w1, b1), (w2, b2), (w3, b3), (w4, b4)):
        fi, fo = w.shape
        fi_p, fo_p = _round_up(fi, _LANE), _round_up(fo, _LANE)
        w_p = jnp.pad(w, ((0, fi_p - fi), (0, fo_p - fo))).astype(compute_dtype)
        b_p = jnp.pad(b, ((0, 0), (0, fo_p - fo))).astype(jnp.float32)
        out.extend([w_p, b_p])
    return tuple(out)


def reference_forward(x, params):
    """Plain-JAX f32 reference of the same forward pass."""
    w1, b1, w2, b2, w3, b3, w4, b4 = params
    x2d = x.reshape(x.shape[0], -1).astype(jnp.float32)
    h = jnp.maximum(x2d @ w1 + b1, 0.0)
    z = h @ w2 + b2
    d = jnp.maximum(z @ w3 + b3, 0.0)
    return d @ w4 + b4


if __name__ == "__main__":
    key = jax.random.PRNGKey(0)
    k_x, k_p, k_x2, k_p2, k_x3 = jax.random.split(key, 5)

    # Small shapes: batch=2, channels=4, seq=16 -> entry_size=64, latent=16
    B, C, T = 2, 4, 16
    entry_size = C * T
    latent_dims = entry_size // 4

    x = jax.random.normal(k_x, (B, C, T), dtype=jnp.float32)
    params = init_params(k_p, entry_size, latent_dims)
    ref = reference_forward(x, params)

    # 1) f32 path: tight tolerance against the f32 reference.
    params_f32 = prepare_params(params, compute_dtype=jnp.float32)
    out_f32 = jax.block_until_ready(
        autoencoder_forward(x, params_f32, entry_size=entry_size))
    assert out_f32.shape == (B, entry_size)
    assert out_f32.dtype == jnp.float32
    assert jnp.allclose(out_f32, ref, atol=1e-4, rtol=1e-4)

    # 2) bf16 path (performance default): bf16 output, looser tolerance.
    params_bf16 = prepare_params(params, compute_dtype=jnp.bfloat16)
    out_bf16 = jax.block_until_ready(
        autoencoder_forward(x, params_bf16, entry_size=entry_size))
    assert out_bf16.shape == (B, entry_size)
    assert out_bf16.dtype == jnp.bfloat16
    assert jnp.allclose(out_bf16.astype(jnp.float32), ref, atol=5e-2, rtol=5e-2)

    # 3) Multi-tile batch grid with a ragged tail (exercises pipelining + pad).
    B2 = 10
    x2 = jax.random.normal(k_x2, (B2, C, T), dtype=jnp.float32)
    out2 = jax.block_until_ready(
        autoencoder_forward(x2, params_f32, entry_size=entry_size, block_b=8))
    assert out2.shape == (B2, entry_size)
    assert jnp.allclose(out2, reference_forward(x2, params),
                        atol=1e-4, rtol=1e-4)

    # 4) Lane-aligned entry_size (128) and B % TB == 0: exercises the no-pad
    #    path (f32 x streams straight into the kernel, cast in-kernel) and the
    #    deeper x-tile pipeline (x_buffers=3).
    B3, C3, T3 = 16, 4, 32
    entry3 = C3 * T3                      # 128
    latent3 = entry3 // 4
    x3 = jax.random.normal(k_x3, (B3, C3, T3), dtype=jnp.float32)
    params3 = init_params(k_p2, entry3, latent3)
    params3_bf16 = prepare_params(params3, compute_dtype=jnp.bfloat16)
    out3 = jax.block_until_ready(
        autoencoder_forward(x3, params3_bf16, entry_size=entry3,
                            block_b=16, x_buffers=3))
    assert out3.shape == (B3, entry3)
    assert jnp.allclose(out3.astype(jnp.float32),
                        reference_forward(x3, params3), atol=5e-2, rtol=5e-2)

    print("KERNEL_OK")
</pallas_src>

<mosaic_0001>
module attributes {stable_mosaic.version = 11 : i64} {
  func.func @_autoencoder_kernel(%arg0: i32, %arg1: memref<8x128xf32, #tpu.memory_space<vmem>>, %arg2: memref<128x128xf32, #tpu.memory_space<vmem>>, %arg3: memref<1x128xf32, #tpu.memory_space<vmem>>, %arg4: memref<128x128xf32, #tpu.memory_space<vmem>>, %arg5: memref<1x128xf32, #tpu.memory_space<vmem>>, %arg6: memref<128x128xf32, #tpu.memory_space<vmem>>, %arg7: memref<1x128xf32, #tpu.memory_space<vmem>>, %arg8: memref<128x128xf32, #tpu.memory_space<vmem>>, %arg9: memref<1x128xf32, #tpu.memory_space<vmem>>, %arg10: memref<8x128xf32, #tpu.memory_space<vmem>>) attributes {dimension_semantics = [#tpu.dimension_semantics<parallel>], iteration_bounds = array<i64: 1>, scalar_prefetch = 0 : i64, scratch_operands = 0 : i64, tpu.core_type = #tpu.core_type<tc>, window_params = [{transform_indices = @transform_0, window_bounds = array<i64: 8, 128>}, {pipeline_mode = #tpu.pipeline_mode<synchronous>, transform_indices = @transform_1, window_bounds = array<i64: 128, 128>}, {pipeline_mode = #tpu.pipeline_mode<synchronous>, transform_indices = @transform_2, window_bounds = array<i64: 1, 128>}, {pipeline_mode = #tpu.pipeline_mode<synchronous>, transform_indices = @transform_3, window_bounds = array<i64: 128, 128>}, {pipeline_mode = #tpu.pipeline_mode<synchronous>, transform_indices = @transform_4, window_bounds = array<i64: 1, 128>}, {pipeline_mode = #tpu.pipeline_mode<synchronous>, transform_indices = @transform_5, window_bounds = array<i64: 128, 128>}, {pipeline_mode = #tpu.pipeline_mode<synchronous>, transform_indices = @transform_6, window_bounds = array<i64: 1, 128>}, {pipeline_mode = #tpu.pipeline_mode<synchronous>, transform_indices = @transform_7, window_bounds = array<i64: 128, 128>}, {pipeline_mode = #tpu.pipeline_mode<synchronous>, transform_indices = @transform_8, window_bounds = array<i64: 1, 128>}, {transform_indices = @transform_9, window_bounds = array<i64: 8, 128>}]} {
    %c0 = arith.constant 0 : index
    %c0_0 = arith.constant 0 : index
    %0 = vector.load %arg1[%c0, %c0_0] : memref<8x128xf32, #tpu.memory_space<vmem>>, vector<8x128xf32>
    %c0_1 = arith.constant 0 : index
    %c0_2 = arith.constant 0 : index
    %1 = vector.load %arg2[%c0_1, %c0_2] : memref<128x128xf32, #tpu.memory_space<vmem>>, vector<128x128xf32>
    %cst = arith.constant dense<0.000000e+00> : vector<8x128xf32>
    %2 = tpu.matmul %0, %1, %cst {dimension_numbers = #tpu.dot_dimension_numbers<[1], [0], [0], [1], [0, 0, 1, 1], [], []>} : vector<8x128xf32>, vector<128x128xf32>, vector<8x128xf32> -> vector<8x128xf32>
    %c0_3 = arith.constant 0 : index
    %c0_4 = arith.constant 0 : index
    %3 = vector.load %arg3[%c0_3, %c0_4] : memref<1x128xf32, #tpu.memory_space<vmem>>, vector<1x128xf32>
    %4 = vector.broadcast %3 : vector<1x128xf32> to vector<8x128xf32>
    %5 = arith.addf %2, %4 : vector<8x128xf32>
    %cst_5 = arith.constant 0.000000e+00 : f32
    %6 = vector.broadcast %cst_5 : f32 to vector<8x128xf32>
    %7 = arith.maximumf %5, %6 : vector<8x128xf32>
    %c0_6 = arith.constant 0 : index
    %c0_7 = arith.constant 0 : index
    %8 = vector.load %arg4[%c0_6, %c0_7] : memref<128x128xf32, #tpu.memory_space<vmem>>, vector<128x128xf32>
    %cst_8 = arith.constant dense<0.000000e+00> : vector<8x128xf32>
    %9 = tpu.matmul %7, %8, %cst_8 {dimension_numbers = #tpu.dot_dimension_numbers<[1], [0], [0], [1], [0, 0, 1, 1], [], []>} : vector<8x128xf32>, vector<128x128xf32>, vector<8x128xf32> -> vector<8x128xf32>
    %c0_9 = arith.constant 0 : index
    %c0_10 = arith.constant 0 : index
    %10 = vector.load %arg5[%c0_9, %c0_10] : memref<1x128xf32, #tpu.memory_space<vmem>>, vector<1x128xf32>
    %11 = vector.broadcast %10 : vector<1x128xf32> to vector<8x128xf32>
    %12 = arith.addf %9, %11 : vector<8x128xf32>
    %c0_11 = arith.constant 0 : index
    %c0_12 = arith.constant 0 : index
    %13 = vector.load %arg6[%c0_11, %c0_12] : memref<128x128xf32, #tpu.memory_space<vmem>>, vector<128x128xf32>
    %cst_13 = arith.constant dense<0.000000e+00> : vector<8x128xf32>
    %14 = tpu.matmul %12, %13, %cst_13 {dimension_numbers = #tpu.dot_dimension_numbers<[1], [0], [0], [1], [0, 0, 1, 1], [], []>} : vector<8x128xf32>, vector<128x128xf32>, vector<8x128xf32> -> vector<8x128xf32>
    %c0_14 = arith.constant 0 : index
    %c0_15 = arith.constant 0 : index
    %15 = vector.load %arg7[%c0_14, %c0_15] : memref<1x128xf32, #tpu.memory_space<vmem>>, vector<1x128xf32>
    %16 = vector.broadcast %15 : vector<1x128xf32> to vector<8x128xf32>
    %17 = arith.addf %14, %16 : vector<8x128xf32>
    %cst_16 = arith.constant 0.000000e+00 : f32
    %18 = vector.broadcast %cst_16 : f32 to vector<8x128xf32>
    %19 = arith.maximumf %17, %18 : vector<8x128xf32>
    %c0_17 = arith.constant 0 : index
    %c0_18 = arith.constant 0 : index
    %20 = vector.load %arg8[%c0_17, %c0_18] : memref<128x128xf32, #tpu.memory_space<vmem>>, vector<128x128xf32>
    %cst_19 = arith.constant dense<0.000000e+00> : vector<8x128xf32>
    %21 = tpu.matmul %19, %20, %cst_19 {dimension_numbers = #tpu.dot_dimension_numbers<[1], [0], [0], [1], [0, 0, 1, 1], [], []>} : vector<8x128xf32>, vector<128x128xf32>, vector<8x128xf32> -> vector<8x128xf32>
    %c0_20 = arith.constant 0 : index
    %c0_21 = arith.constant 0 : index
    %22 = vector.load %arg9[%c0_20, %c0_21] : memref<1x128xf32, #tpu.memory_space<vmem>>, vector<1x128xf32>
    %23 = vector.broadcast %22 : vector<1x128xf32> to vector<8x128xf32>
    %24 = arith.addf %21, %23 : vector<8x128xf32>
    %c0_22 = arith.constant 0 : index
    %c0_23 = arith.constant 0 : index
    %25 = vector.load %arg10[%c0_22, %c0_23] : memref<8x128xf32, #tpu.memory_space<vmem>>, vector<8x128xf32>
    tpu.vector_store %arg10[%c0_22, %c0_23], %24 {strides = array<i32>} : memref<8x128xf32, #tpu.memory_space<vmem>>, vector<8x128xf32>,
    return
  }
  func.func @transform_0(%arg0: i32) -> (i32, i32) {
    %c0_i32 = arith.constant 0 : i32
    %c0_i32_0 = arith.constant 0 : i32
    return %arg0, %c0_i32 : i32, i32
  }
  func.func @transform_1(%arg0: i32) -> (i32, i32) {
    %c0_i32 = arith.constant 0 : i32
    %c0_i32_0 = arith.constant 0 : i32
    %c0_i32_1 = arith.constant 0 : i32
    return %c0_i32, %c0_i32_0 : i32, i32
  }
  func.func @transform_2(%arg0: i32) -> (i32, i32) {
    %c0_i32 = arith.constant 0 : i32
    %c0_i32_0 = arith.constant 0 : i32
    %c0_i32_1 = arith.constant 0 : i32
    return %c0_i32, %c0_i32_0 : i32, i32
  }
  func.func @transform_3(%arg0: i32) -> (i32, i32) {
    %c0_i32 = arith.constant 0 : i32
    %c0_i32_0 = arith.constant 0 : i32
    %c0_i32_1 = arith.constant 0 : i32
    return %c0_i32, %c0_i32_0 : i32, i32
  }
  func.func @transform_4(%arg0: i32) -> (i32, i32) {
    %c0_i32 = arith.constant 0 : i32
    %c0_i32_0 = arith.constant 0 : i32
    %c0_i32_1 = arith.constant 0 : i32
    return %c0_i32, %c0_i32_0 : i32, i32
  }
  func.func @transform_5(%arg0: i32) -> (i32, i32) {
    %c0_i32 = arith.constant 0 : i32
    %c0_i32_0 = arith.constant 0 : i32
    %c0_i32_1 = arith.constant 0 : i32
    return %c0_i32, %c0_i32_0 : i32, i32
  }
  func.func @transform_6(%arg0: i32) -> (i32, i32) {
    %c0_i32 = arith.constant 0 : i32
    %c0_i32_0 = arith.constant 0 : i32
    %c0_i32_1 = arith.constant 0 : i32
    return %c0_i32, %c0_i32_0 : i32, i32
  }
  func.func @transform_7(%arg0: i32) -> (i32, i32) {
    %c0_i32 = arith.constant 0 : i32
    %c0_i32_0 = arith.constant 0 : i32
    %c0_i32_1 = arith.constant 0 : i32
    return %c0_i32, %c0_i32_0 : i32, i32
  }
  func.func @transform_8(%arg0: i32) -> (i32, i32) {
    %c0_i32 = arith.constant 0 : i32
    %c0_i32_0 = arith.constant 0 : i32
    %c0_i32_1 = arith.constant 0 : i32
    return %c0_i32, %c0_i32_0 : i32, i32
  }
  func.func @transform_9(%arg0: i32) -> (i32, i32) {
    %c0_i32 = arith.constant 0 : i32
    %c0_i32_0 = arith.constant 0 : i32
    return %arg0, %c0_i32 : i32, i32
  }
}

module attributes {stable_mosaic.version = 11 : i64} {
  func.func @_autoencoder_kernel(%arg0: i32, %arg1: memref<8x128xf32, #tpu.memory_space<vmem>>, %arg2: memref<128x128xf32, #tpu.memory_space<vmem>>, %arg3: memref<1x128xf32, #tpu.memory_space<vmem>>, %arg4: memref<128x128xf32, #tpu.memory_space<vmem>>, %arg5: memref<1x128xf32, #tpu.memory_space<vmem>>, %arg6: memref<128x128xf32, #tpu.memory_space<vmem>>, %arg7: memref<1x128xf32, #tpu.memory_space<vmem>>, %arg8: memref<128x128xf32, #tpu.memory_space<vmem>>, %arg9: memref<1x128xf32, #tpu.memory_space<vmem>>, %arg10: memref<8x128xf32, #tpu.memory_space<vmem>>) attributes {dimension_semantics = [#tpu.dimension_semantics<parallel>], iteration_bounds = array<i64: 1>, scalar_prefetch = 0 : i64, scratch_operands = 0 : i64, tpu.core_type = #tpu.core_type<tc>, window_params = [{transform_indices = @transform_0, window_bounds = array<i64: 8, 128>}, {pipeline_mode = #tpu.pipeline_mode<synchronous>, transform_indices = @transform_1, window_bounds = array<i64: 128, 128>}, {pipeline_mode = #tpu.pipeline_mode<synchronous>, transform_indices = @transform_2, window_bounds = array<i64: 1, 128>}, {pipeline_mode = #tpu.pipeline_mode<synchronous>, transform_indices = @transform_3, window_bounds = array<i64: 128, 128>}, {pipeline_mode = #tpu.pipeline_mode<synchronous>, transform_indices = @transform_4, window_bounds = array<i64: 1, 128>}, {pipeline_mode = #tpu.pipeline_mode<synchronous>, transform_indices = @transform_5, window_bounds = array<i64: 128, 128>}, {pipeline_mode = #tpu.pipeline_mode<synchronous>, transform_indices = @transform_6, window_bounds = array<i64: 1, 128>}, {pipeline_mode = #tpu.pipeline_mode<synchronous>, transform_indices = @transform_7, window_bounds = array<i64: 128, 128>}, {pipeline_mode = #tpu.pipeline_mode<synchronous>, transform_indices = @transform_8, window_bounds = array<i64: 1, 128>}, {transform_indices = @transform_9, window_bounds = array<i64: 8, 128>}]} {
    %c0 = arith.constant 0 : index
    %c0_0 = arith.constant 0 : index
    %0 = vector.load %arg1[%c0, %c0_0] : memref<8x128xf32, #tpu.memory_space<vmem>>, vector<8x128xf32>
    %c0_1 = arith.constant 0 : index
    %c0_2 = arith.constant 0 : index
    %1 = vector.load %arg2[%c0_1, %c0_2] : memref<128x128xf32, #tpu.memory_space<vmem>>, vector<128x128xf32>
    %cst = arith.constant dense<0.000000e+00> : vector<8x128xf32>
    %2 = tpu.matmul %0, %1, %cst {dimension_numbers = #tpu.dot_dimension_numbers<[1], [0], [0], [1], [0, 0, 1, 1], [], []>} : vector<8x128xf32>, vector<128x128xf32>, vector<8x128xf32> -> vector<8x128xf32>
    %c0_3 = arith.constant 0 : index
    %c0_4 = arith.constant 0 : index
    %3 = vector.load %arg3[%c0_3, %c0_4] : memref<1x128xf32, #tpu.memory_space<vmem>>, vector<1x128xf32>
    %4 = vector.broadcast %3 : vector<1x128xf32> to vector<8x128xf32>
    %5 = arith.addf %2, %4 : vector<8x128xf32>
    %cst_5 = arith.constant 0.000000e+00 : f32
    %6 = vector.broadcast %cst_5 : f32 to vector<8x128xf32>
    %7 = arith.maximumf %5, %6 : vector<8x128xf32>
    %c0_6 = arith.constant 0 : index
    %c0_7 = arith.constant 0 : index
    %8 = vector.load %arg4[%c0_6, %c0_7] : memref<128x128xf32, #tpu.memory_space<vmem>>, vector<128x128xf32>
    %cst_8 = arith.constant dense<0.000000e+00> : vector<8x128xf32>
    %9 = tpu.matmul %7, %8, %cst_8 {dimension_numbers = #tpu.dot_dimension_numbers<[1], [0], [0], [1], [0, 0, 1, 1], [], []>} : vector<8x128xf32>, vector<128x128xf32>, vector<8x128xf32> -> vector<8x128xf32>
    %c0_9 = arith.constant 0 : index
    %c0_10 = arith.constant 0 : index
    %10 = vector.load %arg5[%c0_9, %c0_10] : memref<1x128xf32, #tpu.memory_space<vmem>>, vector<1x128xf32>
    %11 = vector.broadcast %10 : vector<1x128xf32> to vector<8x128xf32>
    %12 = arith.addf %9, %11 : vector<8x128xf32>
    %c0_11 = arith.constant 0 : index
    %c0_12 = arith.constant 0 : index
    %13 = vector.load %arg6[%c0_11, %c0_12] : memref<128x128xf32, #tpu.memory_space<vmem>>, vector<128x128xf32>
    %cst_13 = arith.constant dense<0.000000e+00> : vector<8x128xf32>
    %14 = tpu.matmul %12, %13, %cst_13 {dimension_numbers = #tpu.dot_dimension_numbers<[1], [0], [0], [1], [0, 0, 1, 1], [], []>} : vector<8x128xf32>, vector<128x128xf32>, vector<8x128xf32> -> vector<8x128xf32>
    %c0_14 = arith.constant 0 : index
    %c0_15 = arith.constant 0 : index
    %15 = vector.load %arg7[%c0_14, %c0_15] : memref<1x128xf32, #tpu.memory_space<vmem>>, vector<1x128xf32>
    %16 = vector.broadcast %15 : vector<1x128xf32> to vector<8x128xf32>
    %17 = arith.addf %14, %16 : vector<8x128xf32>
    %cst_16 = arith.constant 0.000000e+00 : f32
    %18 = vector.broadcast %cst_16 : f32 to vector<8x128xf32>
    %19 = arith.maximumf %17, %18 : vector<8x128xf32>
    %c0_17 = arith.constant 0 : index
    %c0_18 = arith.constant 0 : index
    %20 = vector.load %arg8[%c0_17, %c0_18] : memref<128x128xf32, #tpu.memory_space<vmem>>, vector<128x128xf32>
    %cst_19 = arith.constant dense<0.000000e+00> : vector<8x128xf32>
    %21 = tpu.matmul %19, %20, %cst_19 {dimension_numbers = #tpu.dot_dimension_numbers<[1], [0], [0], [1], [0, 0, 1, 1], [], []>} : vector<8x128xf32>, vector<128x128xf32>, vector<8x128xf32> -> vector<8x128xf32>
    %c0_20 = arith.constant 0 : index
    %c0_21 = arith.constant 0 : index
    %22 = vector.load %arg9[%c0_20, %c0_21] : memref<1x128xf32, #tpu.memory_space<vmem>>, vector<1x128xf32>
    %23 = vector.broadcast %22 : vector<1x128xf32> to vector<8x128xf32>
    %24 = arith.addf %21, %23 : vector<8x128xf32>
    %c0_22 = arith.constant 0 : index
    %c0_23 = arith.constant 0 : index
    %25 = vector.load %arg10[%c0_22, %c0_23] : memref<8x128xf32, #tpu.memory_space<vmem>>, vector<8x128xf32>
    tpu.vector_store %arg10[%c0_22, %c0_23], %24 {strides = array<i32>} : memref<8x128xf32, #tpu.memory_space<vmem>>, vector<8x128xf32>,
    return
  }
  func.func @transform_0(%arg0: i32) -> (i32, i32) {
    %c0_i32 = arith.constant 0 : i32
    %c0_i32_0 = arith.constant 0 : i32
    return %arg0, %c0_i32 : i32, i32
  }
  func.func @transform_1(%arg0: i32) -> (i32, i32) {
    %c0_i32 = arith.constant 0 : i32
    %c0_i32_0 = arith.constant 0 : i32
    %c0_i32_1 = arith.constant 0 : i32
    return %c0_i32, %c0_i32_0 : i32, i32
  }
  func.func @transform_2(%arg0: i32) -> (i32, i32) {
    %c0_i32 = arith.constant 0 : i32
    %c0_i32_0 = arith.constant 0 : i32
    %c0_i32_1 = arith.constant 0 : i32
    return %c0_i32, %c0_i32_0 : i32, i32
  }
  func.func @transform_3(%arg0: i32) -> (i32, i32) {
    %c0_i32 = arith.constant 0 : i32
    %c0_i32_0 = arith.constant 0 : i32
    %c0_i32_1 = arith.constant 0 : i32
    return %c0_i32, %c0_i32_0 : i32, i32
  }
  func.func @transform_4(%arg0: i32) -> (i32, i32) {
    %c0_i32 = arith.constant 0 : i32
    %c0_i32_0 = arith.constant 0 : i32
    %c0_i32_1 = arith.constant 0 : i32
    return %c0_i32, %c0_i32_0 : i32, i32
  }
  func.func @transform_5(%arg0: i32) -> (i32, i32) {
    %c0_i32 = arith.constant 0 : i32
    %c0_i32_0 = arith.constant 0 : i32
    %c0_i32_1 = arith.constant 0 : i32
    return %c0_i32, %c0_i32_0 : i32, i32
  }
  func.func @transform_6(%arg0: i32) -> (i32, i32) {
    %c0_i32 = arith.constant 0 : i32
    %c0_i32_0 = arith.constant 0 : i32
    %c0_i32_1 = arith.constant 0 : i32
    return %c0_i32, %c0_i32_0 : i32, i32
  }
  func.func @transform_7(%arg0: i32) -> (i32, i32) {
    %c0_i32 = arith.constant 0 : i32
    %c0_i32_0 = arith.constant 0 : i32
    %c0_i32_1 = arith.constant 0 : i32
    return %c0_i32, %c0_i32_0 : i32, i32
  }
  func.func @transform_8(%arg0: i32) -> (i32, i32) {
    %c0_i32 = arith.constant 0 : i32
    %c0_i32_0 = arith.constant 0 : i32
    %c0_i32_1 = arith.constant 0 : i32
    return %c0_i32, %c0_i32_0 : i32, i32
  }
  func.func @transform_9(%arg0: i32) -> (i32, i32) {
    %c0_i32 = arith.constant 0 : i32
    %c0_i32_0 = arith.constant 0 : i32
    return %arg0, %c0_i32 : i32, i32
  }
}

</mosaic_0001>

<llo_original>
// kernel: _forward_padded.1
$region0: #{_forward_padded.1}
  #allocation0 [shape = 'u32[]', space=smem, size = 0x4, offset = 0x4, fixed_abs, tag = 'smem constant byte address 0x4 - core index']
  #allocation1 [shape = 'u32[144,128]{1,0:T(1,128)}', space=vmem, size = 0x12000, scoped, tag = 'internal scratch']
  %s0 = inlined_call_operand.hbm [shape: f32[8,128], index: 0, kind: input, shape index: {}]
  %s1 = inlined_call_operand.hbm [shape: f32[128,128], index: 1, kind: input, shape index: {}]
  %s2 = inlined_call_operand.vmem [shape: f32[1,128], index: 2, kind: input, shape index: {}]
  %s3 = inlined_call_operand.hbm [shape: f32[128,128], index: 3, kind: input, shape index: {}]
  %s4 = inlined_call_operand.vmem [shape: f32[1,128], index: 4, kind: input, shape index: {}]
  %s5 = inlined_call_operand.hbm [shape: f32[128,128], index: 5, kind: input, shape index: {}]
  %s6 = inlined_call_operand.vmem [shape: f32[1,128], index: 6, kind: input, shape index: {}]
  %s7 = inlined_call_operand.hbm [shape: f32[128,128], index: 7, kind: input, shape index: {}]
  %s8 = inlined_call_operand.vmem [shape: f32[1,128], index: 8, kind: input, shape index: {}]
  %s9 = inlined_call_operand.hbm [shape: f32[8,128], index: 9, kind: output, shape index: {}]
  %s10 = sld [smem:[#allocation0]]
  $region66: #{_forward_padded.1} parent=0
    _
  %s12 = ssub.s32 1, %s10
  %s13 = scalar_select 0, %s12, %s10
  $region1: #{_forward_padded.1} parent=0
    #allocation2 [shape = 'u8[4096]{0}', space=vmem, size = 0x1000, scoped, tag = 'input window, operand 0, single buffered']
    #allocation3 [shape = 's32[1]{0}', space=sflag, size = 0x4, scoped, tag = 'scoped memory for _forward_padded.1']
    #allocation4 [shape = 's32[1]{0}', space=sflag, size = 0x4, scoped, tag = 'scoped memory for _forward_padded.1']
    #allocation5 [shape = 'u8[65536]{0}', space=vmem, size = 0x10000, scoped, tag = 'input window, operand 1, single buffered']
    #allocation6 [shape = 's32[1]{0}', space=sflag, size = 0x4, scoped, tag = 'scoped memory for _forward_padded.1']
    #allocation7 [shape = 'u8[65536]{0}', space=vmem, size = 0x10000, scoped, tag = 'input window, operand 3, single buffered']
    #allocation8 [shape = 'u8[65536]{0}', space=vmem, size = 0x10000, scoped, tag = 'input window, operand 5, single buffered']
    #allocation9 [shape = 's32[1]{0}', space=sflag, size = 0x4, scoped, tag = 'scoped memory for _forward_padded.1']
    #allocation10 [shape = 'u8[65536]{0}', space=vmem, size = 0x10000, scoped, tag = 'input window, operand 7, single buffered']
    #allocation11 [shape = 'u8[4096]{0}', space=vmem, size = 0x1000, scoped, tag = 'output window, operand 0, single buffered']
    %14 = vsyncpa [#allocation3], 0
    %15 = vsyncpa [#allocation6], 0
    %16 = vsyncpa [#allocation9], 0
    %17 = vsyncpa [#allocation4], 0
    // Predicated region
    $region2: #{_forward_padded.1} parent=1 // pred_check
      _
    $region3: #{_forward_padded.1} parent=1 // pred_check_branch
      %19 = sbr.rel (0) target = $region5
    $region4: #{_forward_padded.1} parent=1 // pred_region
      %s21 = ssub.s32 128, 128
      %22 = vsyncadd [#allocation3], %s21
      %s24 = sshll.u32 [#allocation2], 4
      %s25 = int_to_ptr.vmem [resolvable:$true] %s24
      %27 = dma.hbm_to_vmem [thread:$0]  %s0, 128, %s25, [#allocation3]
    $region5: #{_forward_padded.1} parent=1 // pred_fallthru
      _
    // Predicated region
    $region6: #{_forward_padded.1} parent=1 // pred_check
      _
    $region7: #{_forward_padded.1} parent=1 // pred_check_branch
      %29 = sbr.rel (0) target = $region9
    $region8: #{_forward_padded.1} parent=1 // pred_region
      %s31 = ssub.s32 2048, 2048
      %32 = vsyncadd [#allocation6], %s31
      %s33 = sshll.u32 [#allocation5], 4
      %s34 = int_to_ptr.vmem [resolvable:$true] %s33
      %39 = dma.hbm_to_vmem [thread:$0]  %s1, 2048, %s34, [#allocation6], 128, 128, 8
    $region9: #{_forward_padded.1} parent=1 // pred_fallthru
      _
    // Predicated region
    $region10: #{_forward_padded.1} parent=1 // pred_check
      _
    $region11: #{_forward_padded.1} parent=1 // pred_check_branch
      %41 = sbr.rel (0) target = $region13
    $region12: #{_forward_padded.1} parent=1 // pred_region
      _
    $region13: #{_forward_padded.1} parent=1 // pred_fallthru
      _
    // Predicated region
    $region14: #{_forward_padded.1} parent=1 // pred_check
      _
    $region15: #{_forward_padded.1} parent=1 // pred_check_branch
      %43 = sbr.rel (0) target = $region17
    $region16: #{_forward_padded.1} parent=1 // pred_region
      %s45 = ssub.s32 2048, 2048
      %46 = vsyncadd [#allocation6], %s45
      %s47 = sshll.u32 [#allocation7], 4
      %s48 = int_to_ptr.vmem [resolvable:$true] %s47
      %53 = dma.hbm_to_vmem [thread:$0]  %s3, 2048, %s48, [#allocation6], 128, 128, 8
    $region17: #{_forward_padded.1} parent=1 // pred_fallthru
      _
    // Predicated region
    $region18: #{_forward_padded.1} parent=1 // pred_check
      _
    $region19: #{_forward_padded.1} parent=1 // pred_check_branch
      %55 = sbr.rel (0) target = $region21
    $region20: #{_forward_padded.1} parent=1 // pred_region
      _
    $region21: #{_forward_padded.1} parent=1 // pred_fallthru
      _
    // Predicated region
    $region22: #{_forward_padded.1} parent=1 // pred_check
      _
    $region23: #{_forward_padded.1} parent=1 // pred_check_branch
      %57 = sbr.rel (0) target = $region25
    $region24: #{_forward_padded.1} parent=1 // pred_region
      %s59 = ssub.s32 2048, 2048
      %60 = vsyncadd [#allocation9], %s59
      %s61 = sshll.u32 [#allocation8], 4
      %s62 = int_to_ptr.vmem [resolvable:$true] %s61
      %67 = dma.hbm_to_vmem [thread:$0]  %s5, 2048, %s62, [#allocation9], 128, 128, 8
    $region25: #{_forward_padded.1} parent=1 // pred_fallthru
      _
    // Predicated region
    $region26: #{_forward_padded.1} parent=1 // pred_check
      _
    $region27: #{_forward_padded.1} parent=1 // pred_check_branch
      %69 = sbr.rel (0) target = $region29
    $region28: #{_forward_padded.1} parent=1 // pred_region
      _
    $region29: #{_forward_padded.1} parent=1 // pred_fallthru
      _
    // Predicated region
    $region30: #{_forward_padded.1} parent=1 // pred_check
      _
    $region31: #{_forward_padded.1} parent=1 // pred_check_branch
      %71 = sbr.rel (0) target = $region33
    $region32: #{_forward_padded.1} parent=1 // pred_region
      %s73 = ssub.s32 2048, 2048
      %74 = vsyncadd [#allocation9], %s73
      %s75 = sshll.u32 [#allocation10], 4
      %s76 = int_to_ptr.vmem [resolvable:$true] %s75
      %81 = dma.hbm_to_vmem [thread:$0]  %s7, 2048, %s76, [#allocation9], 128, 128, 8
    $region33: #{_forward_padded.1} parent=1 // pred_fallthru
      _
    // Predicated region
    $region34: #{_forward_padded.1} parent=1 // pred_check
      _
    $region35: #{_forward_padded.1} parent=1 // pred_check_branch
      %83 = sbr.rel (0) target = $region37
    $region36: #{_forward_padded.1} parent=1 // pred_region
      _
    $region37: #{_forward_padded.1} parent=1 // pred_fallthru
      _
    // Predicated region
    $region38: #{_forward_padded.1} parent=1 // pred_check
      _
    $region39: #{_forward_padded.1} parent=1 // pred_check_branch
      %85 = sbr.rel (0) target = $region41
    $region40: #{_forward_padded.1} parent=1 // pred_region
      %86 = dma.done [#allocation3], 128
    $region41: #{_forward_padded.1} parent=1 // pred_fallthru
      _
    // Predicated region
    $region42: #{_forward_padded.1} parent=1 // pred_check
      _
    $region43: #{_forward_padded.1} parent=1 // pred_check_branch
      %88 = sbr.rel (0) target = $region45
    $region44: #{_forward_padded.1} parent=1 // pred_region
      %89 = dma.done [#allocation6], 2048
    $region45: #{_forward_padded.1} parent=1 // pred_fallthru
      _
    // Predicated region
    $region46: #{_forward_padded.1} parent=1 // pred_check
      _
    $region47: #{_forward_padded.1} parent=1 // pred_check_branch
      %91 = sbr.rel (0) target = $region49
    $region48: #{_forward_padded.1} parent=1 // pred_region
      %92 = dma.done [#allocation6], 2048
    $region49: #{_forward_padded.1} parent=1 // pred_fallthru
      _
    // Predicated region
    $region50: #{_forward_padded.1} parent=1 // pred_check
      _
    $region51: #{_forward_padded.1} parent=1 // pred_check_branch
      %94 = sbr.rel (0) target = $region53
    $region52: #{_forward_padded.1} parent=1 // pred_region
      %95 = dma.done [#allocation9], 2048
    $region53: #{_forward_padded.1} parent=1 // pred_fallthru
      _
    // Predicated region
    $region54: #{_forward_padded.1} parent=1 // pred_check
      _
    $region55: #{_forward_padded.1} parent=1 // pred_check_branch
      %97 = sbr.rel (0) target = $region57
    $region56: #{_forward_padded.1} parent=1 // pred_region
      %98 = dma.done [#allocation9], 2048
    $region57: #{_forward_padded.1} parent=1 // pred_fallthru
      _
    %v99 = vld [vmem:[#allocation2] sm:$0xff]
    %v100 = vld [vmem:[#allocation5] sm:$0xff]
    %v101 = vld [vmem:[#allocation5 + $0x8] sm:$0xff]
    %v102 = vld [vmem:[#allocation5 + $0x10] sm:$0xff]
    %v103 = vld [vmem:[#allocation5 + $0x18] sm:$0xff]
    %v104 = vld [vmem:[#allocation5 + $0x20] sm:$0xff]
    %v105 = vld [vmem:[#allocation5 + $0x28] sm:$0xff]
    %v106 = vld [vmem:[#allocation5 + $0x30] sm:$0xff]
    %v107 = vld [vmem:[#allocation5 + $0x38] sm:$0xff]
    %v108 = vld [vmem:[#allocation5 + $0x40] sm:$0xff]
    %v109 = vld [vmem:[#allocation5 + $0x48] sm:$0xff]
    %v110 = vld [vmem:[#allocation5 + $0x50] sm:$0xff]
    %v111 = vld [vmem:[#allocation5 + $0x58] sm:$0xff]
    %v112 = vld [vmem:[#allocation5 + $0x60] sm:$0xff]
    %v113 = vld [vmem:[#allocation5 + $0x68] sm:$0xff]
    %v114 = vld [vmem:[#allocation5 + $0x70] sm:$0xff]
    %v115 = vld [vmem:[#allocation5 + $0x78] sm:$0xff]
    %v116 = vld [vmem:[%s2] sm:$0x1]
    %v118 = vlaneseq
    %v119 = vshrl.u32 %v118, 7
    %v120 = vsub.s32 0, %v119
    %v121 = vrot.slane %v116, %v120
    %123 = vmatprep.subr.mxu0 0.0
    %124 = vmatpush1.msra.mxu0 %v100
    %125 = vmatprep.subr.mxu0 0.0
    %126 = vmatpush1.msra.mxu0 %v101
    %127 = vmatprep.subr.mxu0 0.0
    %128 = vmatpush1.msra.mxu0 %v102
    %129 = vmatprep.subr.mxu0 0.0
    %130 = vmatpush1.msra.mxu0 %v103
    %131 = vmatprep.subr.mxu0 0.0
    %132 = vmatpush1.msra.mxu0 %v104
    %133 = vmatprep.subr.mxu0 0.0
    %134 = vmatpush1.msra.mxu0 %v105
    %135 = vmatprep.subr.mxu0 0.0
    %136 = vmatpush1.msra.mxu0 %v106
    %137 = vmatprep.subr.mxu0 0.0
    %138 = vmatpush1.msra.mxu0 %v107
    %139 = vmatprep.subr.mxu0 0.0
    %140 = vmatpush1.msra.mxu0 %v108
    %141 = vmatprep.subr.mxu0 0.0
    %142 = vmatpush1.msra.mxu0 %v109
    %143 = vmatprep.subr.mxu0 0.0
    %144 = vmatpush1.msra.mxu0 %v110
    %145 = vmatprep.subr.mxu0 0.0
    %146 = vmatpush1.msra.mxu0 %v111
    %147 = vmatprep.subr.mxu0 0.0
    %148 = vmatpush1.msra.mxu0 %v112
    %149 = vmatprep.subr.mxu0 0.0
    %150 = vmatpush1.msra.mxu0 %v113
    %151 = vmatprep.subr.mxu0 0.0
    %152 = vmatpush1.msra.mxu0 %v114
    %153 = vmatprep.subr.mxu0 0.0
    %154 = vmatpush1.msra.mxu0 %v115
    %155 = vmatprep.subr.mxu0 0.0
    %156 = vmatpush1.msra.mxu0 0.0
    %157 = vmatprep.subr.mxu0 0.0
    %158 = vmatpush1.msra.mxu0 0.0
    %159 = vmatprep.subr.mxu0 0.0
    %160 = vmatpush1.msra.mxu0 0.0
    %161 = vmatprep.subr.mxu0 0.0
    %162 = vmatpush1.msra.mxu0 0.0
    %163 = vmatprep.subr.mxu0 0.0
    %164 = vmatpush1.msra.mxu0 0.0
    %165 = vmatprep.subr.mxu0 0.0
    %166 = vmatpush1.msra.mxu0 0.0
    %167 = vmatprep.subr.mxu0 0.0
    %168 = vmatpush1.msra.mxu0 0.0
    %169 = vmatprep.subr.mxu0 0.0
    %170 = vmatpush1.msra.mxu0 0.0
    %171 = vmatprep.subr.mxu0 0.0
    %172 = vmatpush1.msra.mxu0 0.0
    %173 = vmatprep.subr.mxu0 0.0
    %174 = vmatpush1.msra.mxu0 0.0
    %175 = vmatprep.subr.mxu0 0.0
    %176 = vmatpush1.msra.mxu0 0.0
    %177 = vmatprep.subr.mxu0 0.0
    %178 = vmatpush1.msra.mxu0 0.0
    %179 = vmatprep.subr.mxu0 0.0
    %180 = vmatpush1.msra.mxu0 0.0
    %181 = vmatprep.subr.mxu0 0.0
    %182 = vmatpush1.msra.mxu0 0.0
    %183 = vmatprep.subr.mxu0 0.0
    %184 = vmatpush1.msra.mxu0 0.0
    %185 = vmatprep.subr.mxu0 0.0
    %186 = vmatpush1.msra.mxu0 0.0
    %187 = vmatprep.mubr.f32.mxu0 0.0
    %188 = vmatmul.mubr.f32.gmra.mrb[0].mxu0 %v99
    %v189 = vpop.f32.mrb[0].mxu0
    %v190 = vadd.f32 %v121, %v189
    %v191 = vpop.f32.mrb[0].mxu0
    %192 = vdwg.mxu0
    %v193 = vmax.f32 %v190, 0.0
    %v194 = vld [vmem:[#allocation7] sm:$0xff]
    %v195 = vld [vmem:[#allocation7 + $0x8] sm:$0xff]
    %v196 = vld [vmem:[#allocation7 + $0x10] sm:$0xff]
    %v197 = vld [vmem:[#allocation7 + $0x18] sm:$0xff]
    %v198 = vld [vmem:[#allocation7 + $0x20] sm:$0xff]
    %v199 = vld [vmem:[#allocation7 + $0x28] sm:$0xff]
    %v200 = vld [vmem:[#allocation7 + $0x30] sm:$0xff]
    %v201 = vld [vmem:[#allocation7 + $0x38] sm:$0xff]
    %v202 = vld [vmem:[#allocation7 + $0x40] sm:$0xff]
    %v203 = vld [vmem:[#allocation7 + $0x48] sm:$0xff]
    %v204 = vld [vmem:[#allocation7 + $0x50] sm:$0xff]
    %v205 = vld [vmem:[#allocation7 + $0x58] sm:$0xff]
    %v206 = vld [vmem:[#allocation7 + $0x60] sm:$0xff]
    %v207 = vld [vmem:[#allocation7 + $0x68] sm:$0xff]
    %v208 = vld [vmem:[#allocation7 + $0x70] sm:$0xff]
    %v209 = vld [vmem:[#allocation7 + $0x78] sm:$0xff]
    %v210 = vld [vmem:[%s4] sm:$0x1]
    %v212 = vlaneseq
    %v213 = vshrl.u32 %v212, 7
    %v214 = vsub.s32 0, %v213
    %v215 = vrot.slane %v210, %v214
    %217 = vmatprep.subr.mxu0 0.0
    %218 = vmatpush1.msra.mxu0 %v194
    %219 = vmatprep.subr.mxu0 0.0
    %220 = vmatpush1.msra.mxu0 %v195
    %221 = vmatprep.subr.mxu0 0.0
    %222 = vmatpush1.msra.mxu0 %v196
    %223 = vmatprep.subr.mxu0 0.0
    %224 = vmatpush1.msra.mxu0 %v197
    %225 = vmatprep.subr.mxu0 0.0
    %226 = vmatpush1.msra.mxu0 %v198
    %227 = vmatprep.subr.mxu0 0.0
    %228 = vmatpush1.msra.mxu0 %v199
    %229 = vmatprep.subr.mxu0 0.0
    %230 = vmatpush1.msra.mxu0 %v200
    %231 = vmatprep.subr.mxu0 0.0
    %232 = vmatpush1.msra.mxu0 %v201
    %233 = vmatprep.subr.mxu0 0.0
    %234 = vmatpush1.msra.mxu0 %v202
    %235 = vmatprep.subr.mxu0 0.0
    %236 = vmatpush1.msra.mxu0 %v203
    %237 = vmatprep.subr.mxu0 0.0
    %238 = vmatpush1.msra.mxu0 %v204
    %239 = vmatprep.subr.mxu0 0.0
    %240 = vmatpush1.msra.mxu0 %v205
    %241 = vmatprep.subr.mxu0 0.0
    %242 = vmatpush1.msra.mxu0 %v206
    %243 = vmatprep.subr.mxu0 0.0
    %244 = vmatpush1.msra.mxu0 %v207
    %245 = vmatprep.subr.mxu0 0.0
    %246 = vmatpush1.msra.mxu0 %v208
    %247 = vmatprep.subr.mxu0 0.0
    %248 = vmatpush1.msra.mxu0 %v209
    %249 = vmatprep.subr.mxu0 0.0
    %250 = vmatpush1.msra.mxu0 0.0
    %251 = vmatprep.subr.mxu0 0.0
    %252 = vmatpush1.msra.mxu0 0.0
    %253 = vmatprep.subr.mxu0 0.0
    %254 = vmatpush1.msra.mxu0 0.0
    %255 = vmatprep.subr.mxu0 0.0
    %256 = vmatpush1.msra.mxu0 0.0
    %257 = vmatprep.subr.mxu0 0.0
    %258 = vmatpush1.msra.mxu0 0.0
    %259 = vmatprep.subr.mxu0 0.0
    %260 = vmatpush1.msra.mxu0 0.0
    %261 = vmatprep.subr.mxu0 0.0
    %262 = vmatpush1.msra.mxu0 0.0
    %263 = vmatprep.subr.mxu0 0.0
    %264 = vmatpush1.msra.mxu0 0.0
    %265 = vmatprep.subr.mxu0 0.0
    %266 = vmatpush1.msra.mxu0 0.0
    %267 = vmatprep.subr.mxu0 0.0
    %268 = vmatpush1.msra.mxu0 0.0
    %269 = vmatprep.subr.mxu0 0.0
    %270 = vmatpush1.msra.mxu0 0.0
    %271 = vmatprep.subr.mxu0 0.0
    %272 = vmatpush1.msra.mxu0 0.0
    %273 = vmatprep.subr.mxu0 0.0
    %274 = vmatpush1.msra.mxu0 0.0
    %275 = vmatprep.subr.mxu0 0.0
    %276 = vmatpush1.msra.mxu0 0.0
    %277 = vmatprep.subr.mxu0 0.0
    %278 = vmatpush1.msra.mxu0 0.0
    %279 = vmatprep.subr.mxu0 0.0
    %280 = vmatpush1.msra.mxu0 0.0
    %281 = vmatprep.mubr.f32.mxu0 0.0
    %282 = vmatmul.mubr.f32.gmra.mrb[0].mxu0 %v193
    %v283 = vpop.f32.mrb[0].mxu0
    %v284 = vadd.f32 %v215, %v283
    %v285 = vpop.f32.mrb[0].mxu0
    %286 = vdwg.mxu0
    %v287 = vld [vmem:[#allocation8] sm:$0xff]
    %v288 = vld [vmem:[#allocation8 + $0x8] sm:$0xff]
    %v289 = vld [vmem:[#allocation8 + $0x10] sm:$0xff]
    %v290 = vld [vmem:[#allocation8 + $0x18] sm:$0xff]
    %v291 = vld [vmem:[#allocation8 + $0x20] sm:$0xff]
    %v292 = vld [vmem:[#allocation8 + $0x28] sm:$0xff]
    %v293 = vld [vmem:[#allocation8 + $0x30] sm:$0xff]
    %v294 = vld [vmem:[#allocation8 + $0x38] sm:$0xff]
    %v295 = vld [vmem:[#allocation8 + $0x40] sm:$0xff]
    %v296 = vld [vmem:[#allocation8 + $0x48] sm:$0xff]
    %v297 = vld [vmem:[#allocation8 + $0x50] sm:$0xff]
    %v298 = vld [vmem:[#allocation8 + $0x58] sm:$0xff]
    %v299 = vld [vmem:[#allocation8 + $0x60] sm:$0xff]
    %v300 = vld [vmem:[#allocation8 + $0x68] sm:$0xff]
    %v301 = vld [vmem:[#allocation8 + $0x70] sm:$0xff]
    %v302 = vld [vmem:[#allocation8 + $0x78] sm:$0xff]
    %v303 = vld [vmem:[%s6] sm:$0x1]
    %v305 = vlaneseq
    %v306 = vshrl.u32 %v305, 7
    %v307 = vsub.s32 0, %v306
    %v308 = vrot.slane %v303, %v307
    %310 = vmatprep.subr.mxu0 0.0
    %311 = vmatpush1.msra.mxu0 %v287
    %312 = vmatprep.subr.mxu0 0.0
    %313 = vmatpush1.msra.mxu0 %v288
    %314 = vmatprep.subr.mxu0 0.0
    %315 = vmatpush1.msra.mxu0 %v289
    %316 = vmatprep.subr.mxu0 0.0
    %317 = vmatpush1.msra.mxu0 %v290
    %318 = vmatprep.subr.mxu0 0.0
    %319 = vmatpush1.msra.mxu0 %v291
    %320 = vmatprep.subr.mxu0 0.0
    %321 = vmatpush1.msra.mxu0 %v292
    %322 = vmatprep.subr.mxu0 0.0
    %323 = vmatpush1.msra.mxu0 %v293
    %324 = vmatprep.subr.mxu0 0.0
    %325 = vmatpush1.msra.mxu0 %v294
    %326 = vmatprep.subr.mxu0 0.0
    %327 = vmatpush1.msra.mxu0 %v295
    %328 = vmatprep.subr.mxu0 0.0
    %329 = vmatpush1.msra.mxu0 %v296
    %330 = vmatprep.subr.mxu0 0.0
    %331 = vmatpush1.msra.mxu0 %v297
    %332 = vmatprep.subr.mxu0 0.0
    %333 = vmatpush1.msra.mxu0 %v298
    %334 = vmatprep.subr.mxu0 0.0
    %335 = vmatpush1.msra.mxu0 %v299
    %336 = vmatprep.subr.mxu0 0.0
    %337 = vmatpush1.msra.mxu0 %v300
    %338 = vmatprep.subr.mxu0 0.0
    %339 = vmatpush1.msra.mxu0 %v301
    %340 = vmatprep.subr.mxu0 0.0
    %341 = vmatpush1.msra.mxu0 %v302
    %342 = vmatprep.subr.mxu0 0.0
    %343 = vmatpush1.msra.mxu0 0.0
    %344 = vmatprep.subr.mxu0 0.0
    %345 = vmatpush1.msra.mxu0 0.0
    %346 = vmatprep.subr.mxu0 0.0
    %347 = vmatpush1.msra.mxu0 0.0
    %348 = vmatprep.subr.mxu0 0.0
    %349 = vmatpush1.msra.mxu0 0.0
    %350 = vmatprep.subr.mxu0 0.0
    %351 = vmatpush1.msra.mxu0 0.0
    %352 = vmatprep.subr.mxu0 0.0
    %353 = vmatpush1.msra.mxu0 0.0
    %354 = vmatprep.subr.mxu0 0.0
    %355 = vmatpush1.msra.mxu0 0.0
    %356 = vmatprep.subr.mxu0 0.0
    %357 = vmatpush1.msra.mxu0 0.0
    %358 = vmatprep.subr.mxu0 0.0
    %359 = vmatpush1.msra.mxu0 0.0
    %360 = vmatprep.subr.mxu0 0.0
    %361 = vmatpush1.msra.mxu0 0.0
    %362 = vmatprep.subr.mxu0 0.0
    %363 = vmatpush1.msra.mxu0 0.0
    %364 = vmatprep.subr.mxu0 0.0
    %365 = vmatpush1.msra.mxu0 0.0
    %366 = vmatprep.subr.mxu0 0.0
    %367 = vmatpush1.msra.mxu0 0.0
    %368 = vmatprep.subr.mxu0 0.0
    %369 = vmatpush1.msra.mxu0 0.0
    %370 = vmatprep.subr.mxu0 0.0
    %371 = vmatpush1.msra.mxu0 0.0
    %372 = vmatprep.subr.mxu0 0.0
    %373 = vmatpush1.msra.mxu0 0.0
    %374 = vmatprep.mubr.f32.mxu0 0.0
    %375 = vmatmul.mubr.f32.gmra.mrb[0].mxu0 %v284
    %v376 = vpop.f32.mrb[0].mxu0
    %v377 = vadd.f32 %v308, %v376
    %v378 = vpop.f32.mrb[0].mxu0
    %379 = vdwg.mxu0
    %v380 = vmax.f32 %v377, 0.0
    %v381 = vld [vmem:[#allocation10] sm:$0xff]
    %v382 = vld [vmem:[#allocation10 + $0x8] sm:$0xff]
    %v383 = vld [vmem:[#allocation10 + $0x10] sm:$0xff]
    %v384 = vld [vmem:[#allocation10 + $0x18] sm:$0xff]
    %v385 = vld [vmem:[#allocation10 + $0x20] sm:$0xff]
    %v386 = vld [vmem:[#allocation10 + $0x28] sm:$0xff]
    %v387 = vld [vmem:[#allocation10 + $0x30] sm:$0xff]
    %v388 = vld [vmem:[#allocation10 + $0x38] sm:$0xff]
    %v389 = vld [vmem:[#allocation10 + $0x40] sm:$0xff]
    %v390 = vld [vmem:[#allocation10 + $0x48] sm:$0xff]
    %v391 = vld [vmem:[#allocation10 + $0x50] sm:$0xff]
    %v392 = vld [vmem:[#allocation10 + $0x58] sm:$0xff]
    %v393 = vld [vmem:[#allocation10 + $0x60] sm:$0xff]
    %v394 = vld [vmem:[#allocation10 + $0x68] sm:$0xff]
    %v395 = vld [vmem:[#allocation10 + $0x70] sm:$0xff]
    %v396 = vld [vmem:[#allocation10 + $0x78] sm:$0xff]
    %v397 = vld [vmem:[%s8] sm:$0x1]
    %v399 = vlaneseq
    %v400 = vshrl.u32 %v399, 7
    %v401 = vsub.s32 0, %v400
    %v402 = vrot.slane %v397, %v401
    %404 = vmatprep.subr.mxu0 0.0
    %405 = vmatpush1.msra.mxu0 %v381
    %406 = vmatprep.subr.mxu0 0.0
    %407 = vmatpush1.msra.mxu0 %v382
    %408 = vmatprep.subr.mxu0 0.0
    %409 = vmatpush1.msra.mxu0 %v383
    %410 = vmatprep.subr.mxu0 0.0
    %411 = vmatpush1.msra.mxu0 %v384
    %412 = vmatprep.subr.mxu0 0.0
    %413 = vmatpush1.msra.mxu0 %v385
    %414 = vmatprep.subr.mxu0 0.0
    %415 = vmatpush1.msra.mxu0 %v386
    %416 = vmatprep.subr.mxu0 0.0
    %417 = vmatpush1.msra.mxu0 %v387
    %418 = vmatprep.subr.mxu0 0.0
    %419 = vmatpush1.msra.mxu0 %v388
    %420 = vmatprep.subr.mxu0 0.0
    %421 = vmatpush1.msra.mxu0 %v389
    %422 = vmatprep.subr.mxu0 0.0
    %423 = vmatpush1.msra.mxu0 %v390
    %424 = vmatprep.subr.mxu0 0.0
    %425 = vmatpush1.msra.mxu0 %v391
    %426 = vmatprep.subr.mxu0 0.0
    %427 = vmatpush1.msra.mxu0 %v392
    %428 = vmatprep.subr.mxu0 0.0
    %429 = vmatpush1.msra.mxu0 %v393
    %430 = vmatprep.subr.mxu0 0.0
    %431 = vmatpush1.msra.mxu0 %v394
    %432 = vmatprep.subr.mxu0 0.0
    %433 = vmatpush1.msra.mxu0 %v395
    %434 = vmatprep.subr.mxu0 0.0
    %435 = vmatpush1.msra.mxu0 %v396
    %436 = vmatprep.subr.mxu0 0.0
    %437 = vmatpush1.msra.mxu0 0.0
    %438 = vmatprep.subr.mxu0 0.0
    %439 = vmatpush1.msra.mxu0 0.0
    %440 = vmatprep.subr.mxu0 0.0
    %441 = vmatpush1.msra.mxu0 0.0
    %442 = vmatprep.subr.mxu0 0.0
    %443 = vmatpush1.msra.mxu0 0.0
    %444 = vmatprep.subr.mxu0 0.0
    %445 = vmatpush1.msra.mxu0 0.0
    %446 = vmatprep.subr.mxu0 0.0
    %447 = vmatpush1.msra.mxu0 0.0
    %448 = vmatprep.subr.mxu0 0.0
    %449 = vmatpush1.msra.mxu0 0.0
    %450 = vmatprep.subr.mxu0 0.0
    %451 = vmatpush1.msra.mxu0 0.0
    %452 = vmatprep.subr.mxu0 0.0
    %453 = vmatpush1.msra.mxu0 0.0
    %454 = vmatprep.subr.mxu0 0.0
    %455 = vmatpush1.msra.mxu0 0.0
    %456 = vmatprep.subr.mxu0 0.0
    %457 = vmatpush1.msra.mxu0 0.0
    %458 = vmatprep.subr.mxu0 0.0
    %459 = vmatpush1.msra.mxu0 0.0
    %460 = vmatprep.subr.mxu0 0.0
    %461 = vmatpush1.msra.mxu0 0.0
    %462 = vmatprep.subr.mxu0 0.0
    %463 = vmatpush1.msra.mxu0 0.0
    %464 = vmatprep.subr.mxu0 0.0
    %465 = vmatpush1.msra.mxu0 0.0
    %466 = vmatprep.subr.mxu0 0.0
    %467 = vmatpush1.msra.mxu0 0.0
    %468 = vmatprep.mubr.f32.mxu0 0.0
    %469 = vmatmul.mubr.f32.gmra.mrb[0].mxu0 %v380
    %v470 = vpop.f32.mrb[0].mxu0
    %v471 = vadd.f32 %v402, %v470
    %v472 = vpop.f32.mrb[0].mxu0
    %473 = vdwg.mxu0
    %474 = vst [vmem:[#allocation11] sm:$0xff] %v471
    // Predicated region
    $region58: #{_forward_padded.1} parent=1 // pred_check
      _
    $region59: #{_forward_padded.1} parent=1 // pred_check_branch
      %476 = sbr.rel (0) target = $region61
    $region60: #{_forward_padded.1} parent=1 // pred_region
      %s478 = ssub.s32 128, 128
      %479 = vsyncadd [#allocation4], %s478
      %s481 = sshll.u32 [#allocation11], 4
      %s482 = int_to_ptr.vmem [resolvable:$true] %s481
      %484 = dma.vmem_to_hbm [thread:$0]  %s482, 128, %s9, [#allocation4]
    $region61: #{_forward_padded.1} parent=1 // pred_fallthru
      _
    // Predicated region
    $region62: #{_forward_padded.1} parent=1 // pred_check
      _
    $region63: #{_forward_padded.1} parent=1 // pred_check_branch
      %486 = sbr.rel (0) target = $region65
    $region64: #{_forward_padded.1} parent=1 // pred_region
      %487 = dma.done [#allocation4], 128
    $region65: #{_forward_padded.1} parent=1 // pred_fallthru
      _
    %488 = vsyncpa [#allocation3], 1
    %489 = vsyncpa [#allocation6], 1
    %490 = vsyncpa [#allocation9], 1
    %491 = vsyncpa [#allocation4], 1

// kernel: _forward_padded.1
$region0: #{_forward_padded.1}
  #allocation0 [shape = 'u32[]', space=smem, size = 0x4, offset = 0x4, fixed_abs, tag = 'smem constant byte address 0x4 - core index']
  #allocation1 [shape = 'u32[144,128]{1,0:T(1,128)}', space=vmem, size = 0x12000, scoped, tag = 'internal scratch']
  %s0 = inlined_call_operand.hbm [shape: f32[8,128], index: 0, kind: input, shape index: {}]
  %s1 = inlined_call_operand.hbm [shape: f32[128,128], index: 1, kind: input, shape index: {}]
  %s2 = inlined_call_operand.vmem [shape: f32[1,128], index: 2, kind: input, shape index: {}]
  %s3 = inlined_call_operand.hbm [shape: f32[128,128], index: 3, kind: input, shape index: {}]
  %s4 = inlined_call_operand.vmem [shape: f32[1,128], index: 4, kind: input, shape index: {}]
  %s5 = inlined_call_operand.hbm [shape: f32[128,128], index: 5, kind: input, shape index: {}]
  %s6 = inlined_call_operand.vmem [shape: f32[1,128], index: 6, kind: input, shape index: {}]
  %s7 = inlined_call_operand.hbm [shape: f32[128,128], index: 7, kind: input, shape index: {}]
  %s8 = inlined_call_operand.vmem [shape: f32[1,128], index: 8, kind: input, shape index: {}]
  %s9 = inlined_call_operand.hbm [shape: f32[8,128], index: 9, kind: output, shape index: {}]
  %s10 = sld [smem:[#allocation0]]
  $region66: #{_forward_padded.1} parent=0
    _
  %s12 = ssub.s32 1, %s10
  %s13 = scalar_select 0, %s12, %s10
  $region1: #{_forward_padded.1} parent=0
    #allocation2 [shape = 'u8[4096]{0}', space=vmem, size = 0x1000, scoped, tag = 'input window, operand 0, single buffered']
    #allocation3 [shape = 's32[1]{0}', space=sflag, size = 0x4, scoped, tag = 'scoped memory for _forward_padded.1']
    #allocation4 [shape = 's32[1]{0}', space=sflag, size = 0x4, scoped, tag = 'scoped memory for _forward_padded.1']
    #allocation5 [shape = 'u8[65536]{0}', space=vmem, size = 0x10000, scoped, tag = 'input window, operand 1, single buffered']
    #allocation6 [shape = 's32[1]{0}', space=sflag, size = 0x4, scoped, tag = 'scoped memory for _forward_padded.1']
    #allocation7 [shape = 'u8[65536]{0}', space=vmem, size = 0x10000, scoped, tag = 'input window, operand 3, single buffered']
    #allocation8 [shape = 'u8[65536]{0}', space=vmem, size = 0x10000, scoped, tag = 'input window, operand 5, single buffered']
    #allocation9 [shape = 's32[1]{0}', space=sflag, size = 0x4, scoped, tag = 'scoped memory for _forward_padded.1']
    #allocation10 [shape = 'u8[65536]{0}', space=vmem, size = 0x10000, scoped, tag = 'input window, operand 7, single buffered']
    #allocation11 [shape = 'u8[4096]{0}', space=vmem, size = 0x1000, scoped, tag = 'output window, operand 0, single buffered']
    %14 = vsyncpa [#allocation3], 0
    %15 = vsyncpa [#allocation6], 0
    %16 = vsyncpa [#allocation9], 0
    %17 = vsyncpa [#allocation4], 0
    // Predicated region
    $region2: #{_forward_padded.1} parent=1 // pred_check
      _
    $region3: #{_forward_padded.1} parent=1 // pred_check_branch
      %19 = sbr.rel (0) target = $region5
    $region4: #{_forward_padded.1} parent=1 // pred_region
      %s21 = ssub.s32 128, 128
      %22 = vsyncadd [#allocation3], %s21
      %s24 = sshll.u32 [#allocation2], 4
      %s25 = int_to_ptr.vmem [resolvable:$true] %s24
      %27 = dma.hbm_to_vmem [thread:$0]  %s0, 128, %s25, [#allocation3]
    $region5: #{_forward_padded.1} parent=1 // pred_fallthru
      _
    // Predicated region
    $region6: #{_forward_padded.1} parent=1 // pred_check
      _
    $region7: #{_forward_padded.1} parent=1 // pred_check_branch
      %29 = sbr.rel (0) target = $region9
    $region8: #{_forward_padded.1} parent=1 // pred_region
      %s31 = ssub.s32 2048, 2048
      %32 = vsyncadd [#allocation6], %s31
      %s33 = sshll.u32 [#allocation5], 4
      %s34 = int_to_ptr.vmem [resolvable:$true] %s33
      %39 = dma.hbm_to_vmem [thread:$0]  %s1, 2048, %s34, [#allocation6], 128, 128, 8
    $region9: #{_forward_padded.1} parent=1 // pred_fallthru
      _
    // Predicated region
    $region10: #{_forward_padded.1} parent=1 // pred_check
      _
    $region11: #{_forward_padded.1} parent=1 // pred_check_branch
      %41 = sbr.rel (0) target = $region13
    $region12: #{_forward_padded.1} parent=1 // pred_region
      _
    $region13: #{_forward_padded.1} parent=1 // pred_fallthru
      _
    // Predicated region
    $region14: #{_forward_padded.1} parent=1 // pred_check
      _
    $region15: #{_forward_padded.1} parent=1 // pred_check_branch
      %43 = sbr.rel (0) target = $region17
    $region16: #{_forward_padded.1} parent=1 // pred_region
      %s45 = ssub.s32 2048, 2048
      %46 = vsyncadd [#allocation6], %s45
      %s47 = sshll.u32 [#allocation7], 4
      %s48 = int_to_ptr.vmem [resolvable:$true] %s47
      %53 = dma.hbm_to_vmem [thread:$0]  %s3, 2048, %s48, [#allocation6], 128, 128, 8
    $region17: #{_forward_padded.1} parent=1 // pred_fallthru
      _
    // Predicated region
    $region18: #{_forward_padded.1} parent=1 // pred_check
      _
    $region19: #{_forward_padded.1} parent=1 // pred_check_branch
      %55 = sbr.rel (0) target = $region21
    $region20: #{_forward_padded.1} parent=1 // pred_region
      _
    $region21: #{_forward_padded.1} parent=1 // pred_fallthru
      _
    // Predicated region
    $region22: #{_forward_padded.1} parent=1 // pred_check
      _
    $region23: #{_forward_padded.1} parent=1 // pred_check_branch
      %57 = sbr.rel (0) target = $region25
    $region24: #{_forward_padded.1} parent=1 // pred_region
      %s59 = ssub.s32 2048, 2048
      %60 = vsyncadd [#allocation9], %s59
      %s61 = sshll.u32 [#allocation8], 4
      %s62 = int_to_ptr.vmem [resolvable:$true] %s61
      %67 = dma.hbm_to_vmem [thread:$0]  %s5, 2048, %s62, [#allocation9], 128, 128, 8
    $region25: #{_forward_padded.1} parent=1 // pred_fallthru
      _
    // Predicated region
    $region26: #{_forward_padded.1} parent=1 // pred_check
      _
    $region27: #{_forward_padded.1} parent=1 // pred_check_branch
      %69 = sbr.rel (0) target = $region29
    $region28: #{_forward_padded.1} parent=1 // pred_region
      _
    $region29: #{_forward_padded.1} parent=1 // pred_fallthru
      _
    // Predicated region
    $region30: #{_forward_padded.1} parent=1 // pred_check
      _
    $region31: #{_forward_padded.1} parent=1 // pred_check_branch
      %71 = sbr.rel (0) target = $region33
    $region32: #{_forward_padded.1} parent=1 // pred_region
      %s73 = ssub.s32 2048, 2048
      %74 = vsyncadd [#allocation9], %s73
      %s75 = sshll.u32 [#allocation10], 4
      %s76 = int_to_ptr.vmem [resolvable:$true] %s75
      %81 = dma.hbm_to_vmem [thread:$0]  %s7, 2048, %s76, [#allocation9], 128, 128, 8
    $region33: #{_forward_padded.1} parent=1 // pred_fallthru
      _
    // Predicated region
    $region34: #{_forward_padded.1} parent=1 // pred_check
      _
    $region35: #{_forward_padded.1} parent=1 // pred_check_branch
      %83 = sbr.rel (0) target = $region37
    $region36: #{_forward_padded.1} parent=1 // pred_region
      _
    $region37: #{_forward_padded.1} parent=1 // pred_fallthru
      _
    // Predicated region
    $region38: #{_forward_padded.1} parent=1 // pred_check
      _
    $region39: #{_forward_padded.1} parent=1 // pred_check_branch
      %85 = sbr.rel (0) target = $region41
    $region40: #{_forward_padded.1} parent=1 // pred_region
      %86 = dma.done [#allocation3], 128
    $region41: #{_forward_padded.1} parent=1 // pred_fallthru
      _
    // Predicated region
    $region42: #{_forward_padded.1} parent=1 // pred_check
      _
    $region43: #{_forward_padded.1} parent=1 // pred_check_branch
      %88 = sbr.rel (0) target = $region45
    $region44: #{_forward_padded.1} parent=1 // pred_region
      %89 = dma.done [#allocation6], 2048
    $region45: #{_forward_padded.1} parent=1 // pred_fallthru
      _
    // Predicated region
    $region46: #{_forward_padded.1} parent=1 // pred_check
      _
    $region47: #{_forward_padded.1} parent=1 // pred_check_branch
      %91 = sbr.rel (0) target = $region49
    $region48: #{_forward_padded.1} parent=1 // pred_region
      %92 = dma.done [#allocation6], 2048
    $region49: #{_forward_padded.1} parent=1 // pred_fallthru
      _
    // Predicated region
    $region50: #{_forward_padded.1} parent=1 // pred_check
      _
    $region51: #{_forward_padded.1} parent=1 // pred_check_branch
      %94 = sbr.rel (0) target = $region53
    $region52: #{_forward_padded.1} parent=1 // pred_region
      %95 = dma.done [#allocation9], 2048
    $region53: #{_forward_padded.1} parent=1 // pred_fallthru
      _
    // Predicated region
    $region54: #{_forward_padded.1} parent=1 // pred_check
      _
    $region55: #{_forward_padded.1} parent=1 // pred_check_branch
      %97 = sbr.rel (0) target = $region57
    $region56: #{_forward_padded.1} parent=1 // pred_region
      %98 = dma.done [#allocation9], 2048
    $region57: #{_forward_padded.1} parent=1 // pred_fallthru
      _
    %v99 = vld [vmem:[#allocation2] sm:$0xff]
    %v100 = vld [vmem:[#allocation5] sm:$0xff]
    %v101 = vld [vmem:[#allocation5 + $0x8] sm:$0xff]
    %v102 = vld [vmem:[#allocation5 + $0x10] sm:$0xff]
    %v103 = vld [vmem:[#allocation5 + $0x18] sm:$0xff]
    %v104 = vld [vmem:[#allocation5 + $0x20] sm:$0xff]
    %v105 = vld [vmem:[#allocation5 + $0x28] sm:$0xff]
    %v106 = vld [vmem:[#allocation5 + $0x30] sm:$0xff]
    %v107 = vld [vmem:[#allocation5 + $0x38] sm:$0xff]
    %v108 = vld [vmem:[#allocation5 + $0x40] sm:$0xff]
    %v109 = vld [vmem:[#allocation5 + $0x48] sm:$0xff]
    %v110 = vld [vmem:[#allocation5 + $0x50] sm:$0xff]
    %v111 = vld [vmem:[#allocation5 + $0x58] sm:$0xff]
    %v112 = vld [vmem:[#allocation5 + $0x60] sm:$0xff]
    %v113 = vld [vmem:[#allocation5 + $0x68] sm:$0xff]
    %v114 = vld [vmem:[#allocation5 + $0x70] sm:$0xff]
    %v115 = vld [vmem:[#allocation5 + $0x78] sm:$0xff]
    %v116 = vld [vmem:[%s2] sm:$0x1]
    %v118 = vlaneseq
    %v119 = vshrl.u32 %v118, 7
    %v120 = vsub.s32 0, %v119
    %v121 = vrot.slane %v116, %v120
    %123 = vmatprep.subr.mxu0 0.0
    %124 = vmatpush1.msra.mxu0 %v100
    %125 = vmatprep.subr.mxu0 0.0
    %126 = vmatpush1.msra.mxu0 %v101
    %127 = vmatprep.subr.mxu0 0.0
    %128 = vmatpush1.msra.mxu0 %v102
    %129 = vmatprep.subr.mxu0 0.0
    %130 = vmatpush1.msra.mxu0 %v103
    %131 = vmatprep.subr.mxu0 0.0
    %132 = vmatpush1.msra.mxu0 %v104
    %133 = vmatprep.subr.mxu0 0.0
    %134 = vmatpush1.msra.mxu0 %v105
    %135 = vmatprep.subr.mxu0 0.0
    %136 = vmatpush1.msra.mxu0 %v106
    %137 = vmatprep.subr.mxu0 0.0
    %138 = vmatpush1.msra.mxu0 %v107
    %139 = vmatprep.subr.mxu0 0.0
    %140 = vmatpush1.msra.mxu0 %v108
    %141 = vmatprep.subr.mxu0 0.0
    %142 = vmatpush1.msra.mxu0 %v109
    %143 = vmatprep.subr.mxu0 0.0
    %144 = vmatpush1.msra.mxu0 %v110
    %145 = vmatprep.subr.mxu0 0.0
    %146 = vmatpush1.msra.mxu0 %v111
    %147 = vmatprep.subr.mxu0 0.0
    %148 = vmatpush1.msra.mxu0 %v112
    %149 = vmatprep.subr.mxu0 0.0
    %150 = vmatpush1.msra.mxu0 %v113
    %151 = vmatprep.subr.mxu0 0.0
    %152 = vmatpush1.msra.mxu0 %v114
    %153 = vmatprep.subr.mxu0 0.0
    %154 = vmatpush1.msra.mxu0 %v115
    %155 = vmatprep.subr.mxu0 0.0
    %156 = vmatpush1.msra.mxu0 0.0
    %157 = vmatprep.subr.mxu0 0.0
    %158 = vmatpush1.msra.mxu0 0.0
    %159 = vmatprep.subr.mxu0 0.0
    %160 = vmatpush1.msra.mxu0 0.0
    %161 = vmatprep.subr.mxu0 0.0
    %162 = vmatpush1.msra.mxu0 0.0
    %163 = vmatprep.subr.mxu0 0.0
    %164 = vmatpush1.msra.mxu0 0.0
    %165 = vmatprep.subr.mxu0 0.0
    %166 = vmatpush1.msra.mxu0 0.0
    %167 = vmatprep.subr.mxu0 0.0
    %168 = vmatpush1.msra.mxu0 0.0
    %169 = vmatprep.subr.mxu0 0.0
    %170 = vmatpush1.msra.mxu0 0.0
    %171 = vmatprep.subr.mxu0 0.0
    %172 = vmatpush1.msra.mxu0 0.0
    %173 = vmatprep.subr.mxu0 0.0
    %174 = vmatpush1.msra.mxu0 0.0
    %175 = vmatprep.subr.mxu0 0.0
    %176 = vmatpush1.msra.mxu0 0.0
    %177 = vmatprep.subr.mxu0 0.0
    %178 = vmatpush1.msra.mxu0 0.0
    %179 = vmatprep.subr.mxu0 0.0
    %180 = vmatpush1.msra.mxu0 0.0
    %181 = vmatprep.subr.mxu0 0.0
    %182 = vmatpush1.msra.mxu0 0.0
    %183 = vmatprep.subr.mxu0 0.0
    %184 = vmatpush1.msra.mxu0 0.0
    %185 = vmatprep.subr.mxu0 0.0
    %186 = vmatpush1.msra.mxu0 0.0
    %187 = vmatprep.mubr.f32.mxu0 0.0
    %188 = vmatmul.mubr.f32.gmra.mrb[0].mxu0 %v99
    %v189 = vpop.f32.mrb[0].mxu0
    %v190 = vadd.f32 %v121, %v189
    %v191 = vpop.f32.mrb[0].mxu0
    %192 = vdwg.mxu0
    %v193 = vmax.f32 %v190, 0.0
    %v194 = vld [vmem:[#allocation7] sm:$0xff]
    %v195 = vld [vmem:[#allocation7 + $0x8] sm:$0xff]
    %v196 = vld [vmem:[#allocation7 + $0x10] sm:$0xff]
    %v197 = vld [vmem:[#allocation7 + $0x18] sm:$0xff]
    %v198 = vld [vmem:[#allocation7 + $0x20] sm:$0xff]
    %v199 = vld [vmem:[#allocation7 + $0x28] sm:$0xff]
    %v200 = vld [vmem:[#allocation7 + $0x30] sm:$0xff]
    %v201 = vld [vmem:[#allocation7 + $0x38] sm:$0xff]
    %v202 = vld [vmem:[#allocation7 + $0x40] sm:$0xff]
    %v203 = vld [vmem:[#allocation7 + $0x48] sm:$0xff]
    %v204 = vld [vmem:[#allocation7 + $0x50] sm:$0xff]
    %v205 = vld [vmem:[#allocation7 + $0x58] sm:$0xff]
    %v206 = vld [vmem:[#allocation7 + $0x60] sm:$0xff]
    %v207 = vld [vmem:[#allocation7 + $0x68] sm:$0xff]
    %v208 = vld [vmem:[#allocation7 + $0x70] sm:$0xff]
    %v209 = vld [vmem:[#allocation7 + $0x78] sm:$0xff]
    %v210 = vld [vmem:[%s4] sm:$0x1]
    %v212 = vlaneseq
    %v213 = vshrl.u32 %v212, 7
    %v214 = vsub.s32 0, %v213
    %v215 = vrot.slane %v210, %v214
    %217 = vmatprep.subr.mxu0 0.0
    %218 = vmatpush1.msra.mxu0 %v194
    %219 = vmatprep.subr.mxu0 0.0
    %220 = vmatpush1.msra.mxu0 %v195
    %221 = vmatprep.subr.mxu0 0.0
    %222 = vmatpush1.msra.mxu0 %v196
    %223 = vmatprep.subr.mxu0 0.0
    %224 = vmatpush1.msra.mxu0 %v197
    %225 = vmatprep.subr.mxu0 0.0
    %226 = vmatpush1.msra.mxu0 %v198
    %227 = vmatprep.subr.mxu0 0.0
    %228 = vmatpush1.msra.mxu0 %v199
    %229 = vmatprep.subr.mxu0 0.0
    %230 = vmatpush1.msra.mxu0 %v200
    %231 = vmatprep.subr.mxu0 0.0
    %232 = vmatpush1.msra.mxu0 %v201
    %233 = vmatprep.subr.mxu0 0.0
    %234 = vmatpush1.msra.mxu0 %v202
    %235 = vmatprep.subr.mxu0 0.0
    %236 = vmatpush1.msra.mxu0 %v203
    %237 = vmatprep.subr.mxu0 0.0
    %238 = vmatpush1.msra.mxu0 %v204
    %239 = vmatprep.subr.mxu0 0.0
    %240 = vmatpush1.msra.mxu0 %v205
    %241 = vmatprep.subr.mxu0 0.0
    %242 = vmatpush1.msra.mxu0 %v206
    %243 = vmatprep.subr.mxu0 0.0
    %244 = vmatpush1.msra.mxu0 %v207
    %245 = vmatprep.subr.mxu0 0.0
    %246 = vmatpush1.msra.mxu0 %v208
    %247 = vmatprep.subr.mxu0 0.0
    %248 = vmatpush1.msra.mxu0 %v209
    %249 = vmatprep.subr.mxu0 0.0
    %250 = vmatpush1.msra.mxu0 0.0
    %251 = vmatprep.subr.mxu0 0.0
    %252 = vmatpush1.msra.mxu0 0.0
    %253 = vmatprep.subr.mxu0 0.0
    %254 = vmatpush1.msra.mxu0 0.0
    %255 = vmatprep.subr.mxu0 0.0
    %256 = vmatpush1.msra.mxu0 0.0
    %257 = vmatprep.subr.mxu0 0.0
    %258 = vmatpush1.msra.mxu0 0.0
    %259 = vmatprep.subr.mxu0 0.0
    %260 = vmatpush1.msra.mxu0 0.0
    %261 = vmatprep.subr.mxu0 0.0
    %262 = vmatpush1.msra.mxu0 0.0
    %263 = vmatprep.subr.mxu0 0.0
    %264 = vmatpush1.msra.mxu0 0.0
    %265 = vmatprep.subr.mxu0 0.0
    %266 = vmatpush1.msra.mxu0 0.0
    %267 = vmatprep.subr.mxu0 0.0
    %268 = vmatpush1.msra.mxu0 0.0
    %269 = vmatprep.subr.mxu0 0.0
    %270 = vmatpush1.msra.mxu0 0.0
    %271 = vmatprep.subr.mxu0 0.0
    %272 = vmatpush1.msra.mxu0 0.0
    %273 = vmatprep.subr.mxu0 0.0
    %274 = vmatpush1.msra.mxu0 0.0
    %275 = vmatprep.subr.mxu0 0.0
    %276 = vmatpush1.msra.mxu0 0.0
    %277 = vmatprep.subr.mxu0 0.0
    %278 = vmatpush1.msra.mxu0 0.0
    %279 = vmatprep.subr.mxu0 0.0
    %280 = vmatpush1.msra.mxu0 0.0
    %281 = vmatprep.mubr.f32.mxu0 0.0
    %282 = vmatmul.mubr.f32.gmra.mrb[0].mxu0 %v193
    %v283 = vpop.f32.mrb[0].mxu0
    %v284 = vadd.f32 %v215, %v283
    %v285 = vpop.f32.mrb[0].mxu0
    %286 = vdwg.mxu0
    %v287 = vld [vmem:[#allocation8] sm:$0xff]
    %v288 = vld [vmem:[#allocation8 + $0x8] sm:$0xff]
    %v289 = vld [vmem:[#allocation8 + $0x10] sm:$0xff]
    %v290 = vld [vmem:[#allocation8 + $0x18] sm:$0xff]
    %v291 = vld [vmem:[#allocation8 + $0x20] sm:$0xff]
    %v292 = vld [vmem:[#allocation8 + $0x28] sm:$0xff]
    %v293 = vld [vmem:[#allocation8 + $0x30] sm:$0xff]
    %v294 = vld [vmem:[#allocation8 + $0x38] sm:$0xff]
    %v295 = vld [vmem:[#allocation8 + $0x40] sm:$0xff]
    %v296 = vld [vmem:[#allocation8 + $0x48] sm:$0xff]
    %v297 = vld [vmem:[#allocation8 + $0x50] sm:$0xff]
    %v298 = vld [vmem:[#allocation8 + $0x58] sm:$0xff]
    %v299 = vld [vmem:[#allocation8 + $0x60] sm:$0xff]
    %v300 = vld [vmem:[#allocation8 + $0x68] sm:$0xff]
    %v301 = vld [vmem:[#allocation8 + $0x70] sm:$0xff]
    %v302 = vld [vmem:[#allocation8 + $0x78] sm:$0xff]
    %v303 = vld [vmem:[%s6] sm:$0x1]
    %v305 = vlaneseq
    %v306 = vshrl.u32 %v305, 7
    %v307 = vsub.s32 0, %v306
    %v308 = vrot.slane %v303, %v307
    %310 = vmatprep.subr.mxu0 0.0
    %311 = vmatpush1.msra.mxu0 %v287
    %312 = vmatprep.subr.mxu0 0.0
    %313 = vmatpush1.msra.mxu0 %v288
    %314 = vmatprep.subr.mxu0 0.0
    %315 = vmatpush1.msra.mxu0 %v289
    %316 = vmatprep.subr.mxu0 0.0
    %317 = vmatpush1.msra.mxu0 %v290
    %318 = vmatprep.subr.mxu0 0.0
    %319 = vmatpush1.msra.mxu0 %v291
    %320 = vmatprep.subr.mxu0 0.0
    %321 = vmatpush1.msra.mxu0 %v292
    %322 = vmatprep.subr.mxu0 0.0
    %323 = vmatpush1.msra.mxu0 %v293
    %324 = vmatprep.subr.mxu0 0.0
    %325 = vmatpush1.msra.mxu0 %v294
    %326 = vmatprep.subr.mxu0 0.0
    %327 = vmatpush1.msra.mxu0 %v295
    %328 = vmatprep.subr.mxu0 0.0
    %329 = vmatpush1.msra.mxu0 %v296
    %330 = vmatprep.subr.mxu0 0.0
    %331 = vmatpush1.msra.mxu0 %v297
    %332 = vmatprep.subr.mxu0 0.0
    %333 = vmatpush1.msra.mxu0 %v298
    %334 = vmatprep.subr.mxu0 0.0
    %335 = vmatpush1.msra.mxu0 %v299
    %336 = vmatprep.subr.mxu0 0.0
    %337 = vmatpush1.msra.mxu0 %v300
    %338 = vmatprep.subr.mxu0 0.0
    %339 = vmatpush1.msra.mxu0 %v301
    %340 = vmatprep.subr.mxu0 0.0
    %341 = vmatpush1.msra.mxu0 %v302
    %342 = vmatprep.subr.mxu0 0.0
    %343 = vmatpush1.msra.mxu0 0.0
    %344 = vmatprep.subr.mxu0 0.0
    %345 = vmatpush1.msra.mxu0 0.0
    %346 = vmatprep.subr.mxu0 0.0
    %347 = vmatpush1.msra.mxu0 0.0
    %348 = vmatprep.subr.mxu0 0.0
    %349 = vmatpush1.msra.mxu0 0.0
    %350 = vmatprep.subr.mxu0 0.0
    %351 = vmatpush1.msra.mxu0 0.0
    %352 = vmatprep.subr.mxu0 0.0
    %353 = vmatpush1.msra.mxu0 0.0
    %354 = vmatprep.subr.mxu0 0.0
    %355 = vmatpush1.msra.mxu0 0.0
    %356 = vmatprep.subr.mxu0 0.0
    %357 = vmatpush1.msra.mxu0 0.0
    %358 = vmatprep.subr.mxu0 0.0
    %359 = vmatpush1.msra.mxu0 0.0
    %360 = vmatprep.subr.mxu0 0.0
    %361 = vmatpush1.msra.mxu0 0.0
    %362 = vmatprep.subr.mxu0 0.0
    %363 = vmatpush1.msra.mxu0 0.0
    %364 = vmatprep.subr.mxu0 0.0
    %365 = vmatpush1.msra.mxu0 0.0
    %366 = vmatprep.subr.mxu0 0.0
    %367 = vmatpush1.msra.mxu0 0.0
    %368 = vmatprep.subr.mxu0 0.0
    %369 = vmatpush1.msra.mxu0 0.0
    %370 = vmatprep.subr.mxu0 0.0
    %371 = vmatpush1.msra.mxu0 0.0
    %372 = vmatprep.subr.mxu0 0.0
    %373 = vmatpush1.msra.mxu0 0.0
    %374 = vmatprep.mubr.f32.mxu0 0.0
    %375 = vmatmul.mubr.f32.gmra.mrb[0].mxu0 %v284
    %v376 = vpop.f32.mrb[0].mxu0
    %v377 = vadd.f32 %v308, %v376
    %v378 = vpop.f32.mrb[0].mxu0
    %379 = vdwg.mxu0
    %v380 = vmax.f32 %v377, 0.0
    %v381 = vld [vmem:[#allocation10] sm:$0xff]
    %v382 = vld [vmem:[#allocation10 + $0x8] sm:$0xff]
    %v383 = vld [vmem:[#allocation10 + $0x10] sm:$0xff]
    %v384 = vld [vmem:[#allocation10 + $0x18] sm:$0xff]
    %v385 = vld [vmem:[#allocation10 + $0x20] sm:$0xff]
    %v386 = vld [vmem:[#allocation10 + $0x28] sm:$0xff]
    %v387 = vld [vmem:[#allocation10 + $0x30] sm:$0xff]
    %v388 = vld [vmem:[#allocation10 + $0x38] sm:$0xff]
    %v389 = vld [vmem:[#allocation10 + $0x40] sm:$0xff]
    %v390 = vld [vmem:[#allocation10 + $0x48] sm:$0xff]
    %v391 = vld [vmem:[#allocation10 + $0x50] sm:$0xff]
    %v392 = vld [vmem:[#allocation10 + $0x58] sm:$0xff]
    %v393 = vld [vmem:[#allocation10 + $0x60] sm:$0xff]
    %v394 = vld [vmem:[#allocation10 + $0x68] sm:$0xff]
    %v395 = vld [vmem:[#allocation10 + $0x70] sm:$0xff]
    %v396 = vld [vmem:[#allocation10 + $0x78] sm:$0xff]
    %v397 = vld [vmem:[%s8] sm:$0x1]
    %v399 = vlaneseq
    %v400 = vshrl.u32 %v399, 7
    %v401 = vsub.s32 0, %v400
    %v402 = vrot.slane %v397, %v401
    %404 = vmatprep.subr.mxu0 0.0
    %405 = vmatpush1.msra.mxu0 %v381
    %406 = vmatprep.subr.mxu0 0.0
    %407 = vmatpush1.msra.mxu0 %v382
    %408 = vmatprep.subr.mxu0 0.0
    %409 = vmatpush1.msra.mxu0 %v383
    %410 = vmatprep.subr.mxu0 0.0
    %411 = vmatpush1.msra.mxu0 %v384
    %412 = vmatprep.subr.mxu0 0.0
    %413 = vmatpush1.msra.mxu0 %v385
    %414 = vmatprep.subr.mxu0 0.0
    %415 = vmatpush1.msra.mxu0 %v386
    %416 = vmatprep.subr.mxu0 0.0
    %417 = vmatpush1.msra.mxu0 %v387
    %418 = vmatprep.subr.mxu0 0.0
    %419 = vmatpush1.msra.mxu0 %v388
    %420 = vmatprep.subr.mxu0 0.0
    %421 = vmatpush1.msra.mxu0 %v389
    %422 = vmatprep.subr.mxu0 0.0
    %423 = vmatpush1.msra.mxu0 %v390
    %424 = vmatprep.subr.mxu0 0.0
    %425 = vmatpush1.msra.mxu0 %v391
    %426 = vmatprep.subr.mxu0 0.0
    %427 = vmatpush1.msra.mxu0 %v392
    %428 = vmatprep.subr.mxu0 0.0
    %429 = vmatpush1.msra.mxu0 %v393
    %430 = vmatprep.subr.mxu0 0.0
    %431 = vmatpush1.msra.mxu0 %v394
    %432 = vmatprep.subr.mxu0 0.0
    %433 = vmatpush1.msra.mxu0 %v395
    %434 = vmatprep.subr.mxu0 0.0
    %435 = vmatpush1.msra.mxu0 %v396
    %436 = vmatprep.subr.mxu0 0.0
    %437 = vmatpush1.msra.mxu0 0.0
    %438 = vmatprep.subr.mxu0 0.0
    %439 = vmatpush1.msra.mxu0 0.0
    %440 = vmatprep.subr.mxu0 0.0
    %441 = vmatpush1.msra.mxu0 0.0
    %442 = vmatprep.subr.mxu0 0.0
    %443 = vmatpush1.msra.mxu0 0.0
    %444 = vmatprep.subr.mxu0 0.0
    %445 = vmatpush1.msra.mxu0 0.0
    %446 = vmatprep.subr.mxu0 0.0
    %447 = vmatpush1.msra.mxu0 0.0
    %448 = vmatprep.subr.mxu0 0.0
    %449 = vmatpush1.msra.mxu0 0.0
    %450 = vmatprep.subr.mxu0 0.0
    %451 = vmatpush1.msra.mxu0 0.0
    %452 = vmatprep.subr.mxu0 0.0
    %453 = vmatpush1.msra.mxu0 0.0
    %454 = vmatprep.subr.mxu0 0.0
    %455 = vmatpush1.msra.mxu0 0.0
    %456 = vmatprep.subr.mxu0 0.0
    %457 = vmatpush1.msra.mxu0 0.0
    %458 = vmatprep.subr.mxu0 0.0
    %459 = vmatpush1.msra.mxu0 0.0
    %460 = vmatprep.subr.mxu0 0.0
    %461 = vmatpush1.msra.mxu0 0.0
    %462 = vmatprep.subr.mxu0 0.0
    %463 = vmatpush1.msra.mxu0 0.0
    %464 = vmatprep.subr.mxu0 0.0
    %465 = vmatpush1.msra.mxu0 0.0
    %466 = vmatprep.subr.mxu0 0.0
    %467 = vmatpush1.msra.mxu0 0.0
    %468 = vmatprep.mubr.f32.mxu0 0.0
    %469 = vmatmul.mubr.f32.gmra.mrb[0].mxu0 %v380
    %v470 = vpop.f32.mrb[0].mxu0
    %v471 = vadd.f32 %v402, %v470
    %v472 = vpop.f32.mrb[0].mxu0
    %473 = vdwg.mxu0
    %474 = vst [vmem:[#allocation11] sm:$0xff] %v471
    // Predicated region
    $region58: #{_forward_padded.1} parent=1 // pred_check
      _
    $region59: #{_forward_padded.1} parent=1 // pred_check_branch
      %476 = sbr.rel (0) target = $region61
    $region60: #{_forward_padded.1} parent=1 // pred_region
      %s478 = ssub.s32 128, 128
      %479 = vsyncadd [#allocation4], %s478
      %s481 = sshll.u32 [#allocation11], 4
      %s482 = int_to_ptr.vmem [resolvable:$true] %s481
      %484 = dma.vmem_to_hbm [thread:$0]  %s482, 128, %s9, [#allocation4]
    $region61: #{_forward_padded.1} parent=1 // pred_fallthru
      _
    // Predicated region
    $region62: #{_forward_padded.1} parent=1 // pred_check
      _
    $region63: #{_forward_padded.1} parent=1 // pred_check_branch
      %486 = sbr.rel (0) target = $region65
    $region64: #{_forward_padded.1} parent=1 // pred_region
      %487 = dma.done [#allocation4], 128
    $region65: #{_forward_padded.1} parent=1 // pred_fallthru
      _
    %488 = vsyncpa [#allocation3], 1
    %489 = vsyncpa [#allocation6], 1
    %490 = vsyncpa [#allocation9], 1
    %491 = vsyncpa [#allocation4], 1

</llo_original>
